<compile_context>
chip_gen: v5e
topology: v5e:2x2
jax: 0.10.0
libtpu: 0.0.40
codegen_flags: <defaults>
</compile_context>

<pallas_src>
import functools

import jax
import jax.numpy as jnp
import numpy as np
from jax import lax
from jax.experimental import pallas as pl
from jax.experimental.pallas import tpu as pltpu


# ---------------------------------------------------------------------------
# Pallas kernel: modulated bilinear combine + deform-conv matmuls + GroupNorm + ReLU
# ---------------------------------------------------------------------------
def _dcn_gn_relu_kernel(eps, v_ref, wm_ref, w_ref, a_ref, gamma_ref, beta_ref, o_ref):
    # v_ref : (1, 4*Cin, K*HW) bf16   bilinear neighbour values, row = j*Cin + ic
    # wm_ref: (1, 4,     K*HW) f32    modulation-mask * bilinear weight (compact, no Cin bcast)
    # w_ref : (K, Cout, Cin)   bf16   deform-conv weights, per tap
    # a_ref : (Cout, Cout)     f32    group-averaging matrix (1/(gs*HW) within a group)
    # gamma_ref, beta_ref: (Cout, 1) f32
    # o_ref : (1, Cout, HW)    f32    lane-dense output block
    f32 = jnp.float32
    ktaps, cout, cin = w_ref.shape
    hw = o_ref.shape[2]

    # Modulated bilinear combine (VPU, f32).  The compact (1, K*HW) weight rows broadcast
    # over the Cin sublanes natively; values are upcast right after load (v5e-safe).
    cols = (v_ref[0, 0 * cin:1 * cin, :].astype(f32) * wm_ref[0, 0:1, :]
            + v_ref[0, 1 * cin:2 * cin, :].astype(f32) * wm_ref[0, 1:2, :]
            + v_ref[0, 2 * cin:3 * cin, :].astype(f32) * wm_ref[0, 2:3, :]
            + v_ref[0, 3 * cin:4 * cin, :].astype(f32) * wm_ref[0, 3:4, :])   # (Cin, K*HW)
    cols_bf = cols.astype(jnp.bfloat16)                                        # MXU operand dtype

    # Deformable conv as per-tap MXU matmuls (lane-aligned static slices of cols),
    # accumulated in f32:  out[o, p] = sum_{k, ic} W[k, o, ic] * cols[ic, k*HW + p]
    out = jnp.dot(w_ref[0], cols_bf[:, 0:hw], preferred_element_type=f32)      # (Cout, HW)
    for k in range(1, ktaps):
        out = out + jnp.dot(w_ref[k], cols_bf[:, k * hw:(k + 1) * hw],
                            preferred_element_type=f32)

    # GroupNorm (biased variance, two-pass for numerical safety) + folded affine + ReLU.
    s_c = jnp.sum(out, axis=1, keepdims=True)                                  # (Cout, 1)
    mean_c = jnp.dot(a_ref[...], s_c, preferred_element_type=f32)              # group mean / chan
    d = out - mean_c
    var_c = jnp.dot(a_ref[...], jnp.sum(d * d, axis=1, keepdims=True),
                    preferred_element_type=f32)                                # group var / chan
    scale = lax.rsqrt(var_c + eps) * gamma_ref[...]                            # (Cout, 1)
    o_ref[0] = jnp.maximum(d * scale + beta_ref[...], 0.0).astype(o_ref.dtype)


# ---------------------------------------------------------------------------
# Plain-JAX glue: align-corners resize + deformable bilinear sampling taps
# ---------------------------------------------------------------------------
def _interpolate_bilinear_align_corners(x, size):
    """F.interpolate(x, size=size, mode='bilinear', align_corners=True)."""
    B, C, H, W = x.shape
    Ho, Wo = size
    if (Ho, Wo) == (H, W):
        return x
    ys = jnp.arange(Ho, dtype=jnp.float32) * (0.0 if Ho == 1 else (H - 1) / (Ho - 1))
    xs = jnp.arange(Wo, dtype=jnp.float32) * (0.0 if Wo == 1 else (W - 1) / (Wo - 1))
    y0 = jnp.clip(jnp.floor(ys).astype(jnp.int32), 0, H - 1)
    x0 = jnp.clip(jnp.floor(xs).astype(jnp.int32), 0, W - 1)
    y1 = jnp.minimum(y0 + 1, H - 1)
    x1 = jnp.minimum(x0 + 1, W - 1)
    wy = (ys - y0.astype(jnp.float32))[None, None, :, None]
    wx = (xs - x0.astype(jnp.float32))[None, None, None, :]
    rows = x[:, :, y0, :] * (1.0 - wy) + x[:, :, y1, :] * wy
    return rows[:, :, :, x0] * (1.0 - wx) + rows[:, :, :, x1] * wx


def _bilinear_taps(x, offset, *, kh, kw, stride, padding, dilation):
    """Four bilinear-neighbour value arrays (B,Cin,K,Ho*Wo) + weights (B,K,Ho*Wo)."""
    B, Cin, H, W = x.shape
    K = kh * kw
    Ho = (H + 2 * padding - dilation * (kh - 1) - 1) // stride + 1
    Wo = (W + 2 * padding - dilation * (kw - 1) - 1) // stride + 1
    HWo = Ho * Wo

    # mmcv offset channel layout: (dy, dx) interleaved per kernel tap (row-major taps)
    off = offset.reshape(B, K, 2, Ho, Wo).astype(jnp.float32)
    off_y, off_x = off[:, :, 0], off[:, :, 1]

    kk = jnp.arange(K)
    ki = (kk // kw).astype(jnp.float32) * dilation
    kj = (kk % kw).astype(jnp.float32) * dilation
    base_y = jnp.arange(Ho, dtype=jnp.float32) * stride - padding
    base_x = jnp.arange(Wo, dtype=jnp.float32) * stride - padding
    p_y = base_y[None, None, :, None] + ki[None, :, None, None] + off_y   # (B,K,Ho,Wo)
    p_x = base_x[None, None, None, :] + kj[None, :, None, None] + off_x

    y0 = jnp.floor(p_y)
    x0 = jnp.floor(p_x)
    ly = p_y - y0
    lx = p_x - x0
    y0i = y0.astype(jnp.int32)
    x0i = x0.astype(jnp.int32)

    x_flat = x.reshape(B, Cin, H * W)

    # TODO(synk): the data-dependent per-pixel gather stays in XLA; for large Cin it could be
    # fused into the Pallas kernel with a manual DMA gather (memory_space=pl.ANY + scalar-
    # prefetched flat indices) so neighbour fetch, combine and matmul share one HBM pass.
    def gather(yi, xi):
        valid = ((yi >= 0) & (yi < H) & (xi >= 0) & (xi < W)).astype(x.dtype)
        yc = jnp.clip(yi, 0, H - 1)
        xc = jnp.clip(xi, 0, W - 1)
        idx = (yc * W + xc).reshape(B, K * HWo)
        g = jax.vmap(lambda xb, ib: xb[:, ib])(x_flat, idx)               # (B, Cin, K*HWo)
        return g.reshape(B, Cin, K, HWo) * valid.reshape(B, 1, K, HWo)

    vals = (gather(y0i, x0i), gather(y0i, x0i + 1),
            gather(y0i + 1, x0i), gather(y0i + 1, x0i + 1))
    wts = ((1.0 - ly) * (1.0 - lx), (1.0 - ly) * lx, ly * (1.0 - lx), ly * lx)
    wts = tuple(w.reshape(B, K, HWo) for w in wts)
    return vals, wts, Ho, Wo


# ---------------------------------------------------------------------------
# Wrapper: DCNv2_SA.forward
# ---------------------------------------------------------------------------
def dcnv2_sa_forward(x, offset, mask, weight, gamma, beta, *, num_groups=8,
                     stride=1, padding=1, dilation=1, eps=1e-5, size=None):
    # Note: the spec module builds ModulatedDeformConv2d(..., bias=False) -> no conv bias.
    if size is not None:
        x = _interpolate_bilinear_align_corners(x, size)

    B, Cin, H, W = x.shape
    Cout, _, kh, kw = weight.shape
    K = kh * kw
    assert Cout % num_groups == 0
    gs = Cout // num_groups

    vals, wts, Ho, Wo = _bilinear_taps(x, offset, kh=kh, kw=kw, stride=stride,
                                       padding=padding, dilation=dilation)
    HW = Ho * Wo

    # Stacked bilinear neighbour values, bf16, row index = j*Cin + ic (pure reshapes, no transpose).
    v_stk = jnp.stack(vals, axis=1).reshape(B, 4 * Cin, K * HW).astype(jnp.bfloat16)
    # Modulation mask premultiplied into the four bilinear weights -> compact (B, 4, K*HW), f32.
    m = mask.reshape(B, 1, K, HW).astype(jnp.float32)
    wm_stk = (jnp.stack(wts, axis=1).reshape(B, 4, K, HW) * m).reshape(B, 4, K * HW)
    # Conv weights per tap: (K, Cout, Cin), bf16 (tiny constant).
    w_taps = jnp.transpose(weight.reshape(Cout, Cin, K), (2, 0, 1)).astype(jnp.bfloat16)
    # Group-averaging matrix: A @ per-channel sums == per-channel group mean.
    group_of = jnp.arange(Cout) // gs
    a_mat = (group_of[:, None] == group_of[None, :]).astype(jnp.float32) / float(gs * HW)
    gamma2 = gamma.reshape(Cout, 1).astype(jnp.float32)
    beta2 = beta.reshape(Cout, 1).astype(jnp.float32)

    kernel = functools.partial(_dcn_gn_relu_kernel, float(eps))

    # One grid step per batch sample; "parallel" so v7x's two TensorCores split it.
    # TODO(synk): for large Cin/HW add an HW tile axis (arbitrary) with VMEM scratch for the GN
    # partial sums, and fold several samples per step when B is large / per-sample work is small.
    y = pl.pallas_call(
        kernel,
        out_shape=jax.ShapeDtypeStruct((B, Cout, HW), jnp.float32),
        grid_spec=pltpu.PrefetchScalarGridSpec(
            num_scalar_prefetch=0,
            grid=(B,),
            in_specs=[
                pl.BlockSpec((1, 4 * Cin, K * HW), lambda b: (b, 0, 0)),
                pl.BlockSpec((1, 4, K * HW), lambda b: (b, 0, 0)),
                pl.BlockSpec((K, Cout, Cin), lambda b: (0, 0, 0)),
                pl.BlockSpec((Cout, Cout), lambda b: (0, 0)),
                pl.BlockSpec((Cout, 1), lambda b: (0, 0)),
                pl.BlockSpec((Cout, 1), lambda b: (0, 0)),
            ],
            out_specs=pl.BlockSpec((1, Cout, HW), lambda b: (b, 0, 0)),
        ),
        compiler_params=pltpu.CompilerParams(
            dimension_semantics=("parallel",),
            vmem_limit_bytes=32 * 1024 * 1024,   # safe on v5e/v6e (128 MiB) and v7x (64 MiB)
        ),
    )(v_stk, wm_stk, w_taps, a_mat, gamma2, beta2)

    # (B, Cout, HW) is already NCHW-flat: plain reshape, no transpose.
    return y.reshape(B, Cout, Ho, Wo)


# ---------------------------------------------------------------------------
# Pure-JAX f32 reference (independent math path) for validation
# ---------------------------------------------------------------------------
def _reference_forward(x, offset, mask, weight, gamma, beta, *, num_groups=8,
                       stride=1, padding=1, dilation=1, eps=1e-5, size=None):
    if size is not None:
        x = _interpolate_bilinear_align_corners(x, size)
    B, Cin, H, W = x.shape
    Cout, _, kh, kw = weight.shape
    K = kh * kw
    vals, wts, Ho, Wo = _bilinear_taps(x, offset, kh=kh, kw=kw, stride=stride,
                                       padding=padding, dilation=dilation)
    HW = Ho * Wo
    sampled = sum(v * w.reshape(B, 1, K, HW) for v, w in zip(vals, wts))   # (B,Cin,K,HW)
    sampled = sampled * mask.reshape(B, 1, K, HW)
    out = jnp.einsum('bckp,ock->bop', sampled, weight.reshape(Cout, Cin, K))  # (B,Cout,HW)
    gs = Cout // num_groups
    og = out.reshape(B, num_groups, gs * HW)
    mean = og.mean(axis=2, keepdims=True)
    var = og.var(axis=2, keepdims=True)
    y = (og - mean) * lax.rsqrt(var + eps)
    y = y.reshape(B, Cout, HW) * gamma[None, :, None] + beta[None, :, None]
    return jnp.maximum(y, 0.0).reshape(B, Cout, Ho, Wo)


if __name__ == "__main__":
    B, Cin, Cout, H, W = 2, 8, 16, 16, 16   # Cout divisible by GN groups (8)
    K = 9

    key = jax.random.PRNGKey(0)
    k1, k2, k3, k4, k5, k6 = jax.random.split(key, 6)
    x = jax.random.normal(k1, (B, Cin, H, W), jnp.float32)
    offset = 1.5 * jax.random.normal(k2, (B, 2 * K, H, W), jnp.float32)
    mask = jax.nn.sigmoid(jax.random.normal(k3, (B, K, H, W), jnp.float32))

    # deterministic synthetic parameters (ModulatedDeformConv2d weight, GN affine)
    weight = 0.1 * jax.random.normal(k4, (Cout, Cin, 3, 3), jnp.float32)
    gamma = 1.0 + 0.1 * jax.random.normal(k5, (Cout,), jnp.float32)
    beta = 0.1 * jax.random.normal(k6, (Cout,), jnp.float32)

    y = jax.block_until_ready(dcnv2_sa_forward(x, offset, mask, weight, gamma, beta))
    y_ref = jax.block_until_ready(
        _reference_forward(x, offset, mask, weight, gamma, beta))

    np.testing.assert_allclose(np.asarray(y), np.asarray(y_ref), rtol=2e-2, atol=2e-2)
    print("KERNEL_OK")
</pallas_src>

<mosaic_0001>
module attributes {stable_mosaic.version = 11 : i64} {
  func.func @_dcn_gn_relu_kernel(%arg0: i32, %arg1: memref<1x32x2304xbf16, #tpu.memory_space<vmem>>, %arg2: memref<1x4x2304xf32, #tpu.memory_space<vmem>>, %arg3: memref<9x16x8xbf16, #tpu.memory_space<vmem>>, %arg4: memref<16x16xf32, #tpu.memory_space<vmem>>, %arg5: memref<16x1xf32, #tpu.memory_space<vmem>>, %arg6: memref<16x1xf32, #tpu.memory_space<vmem>>, %arg7: memref<1x16x256xf32, #tpu.memory_space<vmem>>) attributes {dimension_semantics = [#tpu.dimension_semantics<parallel>], iteration_bounds = array<i64: 2>, scalar_prefetch = 0 : i64, scratch_operands = 0 : i64, tpu.core_type = #tpu.core_type<tc>, window_params = [{transform_indices = @transform_0, window_bounds = array<i64: 1, 32, 2304>}, {transform_indices = @transform_1, window_bounds = array<i64: 1, 4, 2304>}, {pipeline_mode = #tpu.pipeline_mode<synchronous>, transform_indices = @transform_2, window_bounds = array<i64: 9, 16, 8>}, {pipeline_mode = #tpu.pipeline_mode<synchronous>, transform_indices = @transform_3, window_bounds = array<i64: 16, 16>}, {pipeline_mode = #tpu.pipeline_mode<synchronous>, transform_indices = @transform_4, window_bounds = array<i64: 16, 1>}, {pipeline_mode = #tpu.pipeline_mode<synchronous>, transform_indices = @transform_5, window_bounds = array<i64: 16, 1>}, {transform_indices = @transform_6, window_bounds = array<i64: 1, 16, 256>}]} {
    %c0 = arith.constant 0 : index
    %c0_0 = arith.constant 0 : index
    %c0_1 = arith.constant 0 : index
    %0 = vector.load %arg1[%c0, %c0_0, %c0_1] : memref<1x32x2304xbf16, #tpu.memory_space<vmem>>, vector<1x8x2304xbf16>
    %1 = vector.shape_cast %0 : vector<1x8x2304xbf16> to vector<8x2304xbf16>
    %2 = arith.extf %1 : vector<8x2304xbf16> to vector<8x2304xf32>
    %c0_2 = arith.constant 0 : index
    %c0_3 = arith.constant 0 : index
    %c0_4 = arith.constant 0 : index
    %3 = vector.load %arg2[%c0_2, %c0_3, %c0_4] : memref<1x4x2304xf32, #tpu.memory_space<vmem>>, vector<1x1x2304xf32>
    %4 = vector.shape_cast %3 : vector<1x1x2304xf32> to vector<1x2304xf32>
    %5 = vector.broadcast %4 : vector<1x2304xf32> to vector<8x2304xf32>
    %6 = arith.mulf %2, %5 : vector<8x2304xf32>
    %c0_5 = arith.constant 0 : index
    %c8 = arith.constant 8 : index
    %c0_6 = arith.constant 0 : index
    %7 = vector.load %arg1[%c0_5, %c8, %c0_6] : memref<1x32x2304xbf16, #tpu.memory_space<vmem>>, vector<1x8x2304xbf16>
    %8 = vector.shape_cast %7 : vector<1x8x2304xbf16> to vector<8x2304xbf16>
    %9 = arith.extf %8 : vector<8x2304xbf16> to vector<8x2304xf32>
    %c0_7 = arith.constant 0 : index
    %c1 = arith.constant 1 : index
    %c0_8 = arith.constant 0 : index
    %10 = vector.load %arg2[%c0_7, %c1, %c0_8] : memref<1x4x2304xf32, #tpu.memory_space<vmem>>, vector<1x1x2304xf32>
    %11 = vector.shape_cast %10 : vector<1x1x2304xf32> to vector<1x2304xf32>
    %12 = vector.broadcast %11 : vector<1x2304xf32> to vector<8x2304xf32>
    %13 = arith.mulf %9, %12 : vector<8x2304xf32>
    %14 = arith.addf %6, %13 : vector<8x2304xf32>
    %c0_9 = arith.constant 0 : index
    %c16 = arith.constant 16 : index
    %c0_10 = arith.constant 0 : index
    %15 = vector.load %arg1[%c0_9, %c16, %c0_10] : memref<1x32x2304xbf16, #tpu.memory_space<vmem>>, vector<1x8x2304xbf16>
    %16 = vector.shape_cast %15 : vector<1x8x2304xbf16> to vector<8x2304xbf16>
    %17 = arith.extf %16 : vector<8x2304xbf16> to vector<8x2304xf32>
    %c0_11 = arith.constant 0 : index
    %c2 = arith.constant 2 : index
    %c0_12 = arith.constant 0 : index
    %18 = vector.load %arg2[%c0_11, %c2, %c0_12] : memref<1x4x2304xf32, #tpu.memory_space<vmem>>, vector<1x1x2304xf32>
    %19 = vector.shape_cast %18 : vector<1x1x2304xf32> to vector<1x2304xf32>
    %20 = vector.broadcast %19 : vector<1x2304xf32> to vector<8x2304xf32>
    %21 = arith.mulf %17, %20 : vector<8x2304xf32>
    %22 = arith.addf %14, %21 : vector<8x2304xf32>
    %c0_13 = arith.constant 0 : index
    %c24 = arith.constant 24 : index
    %c0_14 = arith.constant 0 : index
    %23 = vector.load %arg1[%c0_13, %c24, %c0_14] : memref<1x32x2304xbf16, #tpu.memory_space<vmem>>, vector<1x8x2304xbf16>
    %24 = vector.shape_cast %23 : vector<1x8x2304xbf16> to vector<8x2304xbf16>
    %25 = arith.extf %24 : vector<8x2304xbf16> to vector<8x2304xf32>
    %c0_15 = arith.constant 0 : index
    %c3 = arith.constant 3 : index
    %c0_16 = arith.constant 0 : index
    %26 = vector.load %arg2[%c0_15, %c3, %c0_16] : memref<1x4x2304xf32, #tpu.memory_space<vmem>>, vector<1x1x2304xf32>
    %27 = vector.shape_cast %26 : vector<1x1x2304xf32> to vector<1x2304xf32>
    %28 = vector.broadcast %27 : vector<1x2304xf32> to vector<8x2304xf32>
    %29 = arith.mulf %25, %28 : vector<8x2304xf32>
    %30 = arith.addf %22, %29 : vector<8x2304xf32>
    %31 = arith.truncf %30 : vector<8x2304xf32> to vector<8x2304xbf16>
    %c0_17 = arith.constant 0 : index
    %c0_18 = arith.constant 0 : index
    %c0_19 = arith.constant 0 : index
    %32 = vector.load %arg3[%c0_17, %c0_18, %c0_19] : memref<9x16x8xbf16, #tpu.memory_space<vmem>>, vector<1x16x8xbf16>
    %33 = vector.shape_cast %32 : vector<1x16x8xbf16> to vector<16x8xbf16>
    %34 = vector.extract_strided_slice %31 {offsets = [0, 0], sizes = [8, 256], strides = [1, 1]} : vector<8x2304xbf16> to vector<8x256xbf16>
    %cst = arith.constant dense<0.000000e+00> : vector<16x256xf32>
    %35 = tpu.matmul %33, %34, %cst {dimension_numbers = #tpu.dot_dimension_numbers<[1], [0], [0], [1], [0, 0, 1, 1], [], []>} : vector<16x8xbf16>, vector<8x256xbf16>, vector<16x256xf32> -> vector<16x256xf32>
    %c1_20 = arith.constant 1 : index
    %c0_21 = arith.constant 0 : index
    %c0_22 = arith.constant 0 : index
    %36 = vector.load %arg3[%c1_20, %c0_21, %c0_22] : memref<9x16x8xbf16, #tpu.memory_space<vmem>>, vector<1x16x8xbf16>
    %37 = vector.shape_cast %36 : vector<1x16x8xbf16> to vector<16x8xbf16>
    %38 = vector.extract_strided_slice %31 {offsets = [0, 256], sizes = [8, 256], strides = [1, 1]} : vector<8x2304xbf16> to vector<8x256xbf16>
    %cst_23 = arith.constant dense<0.000000e+00> : vector<16x256xf32>
    %39 = tpu.matmul %37, %38, %cst_23 {dimension_numbers = #tpu.dot_dimension_numbers<[1], [0], [0], [1], [0, 0, 1, 1], [], []>} : vector<16x8xbf16>, vector<8x256xbf16>, vector<16x256xf32> -> vector<16x256xf32>
    %40 = arith.addf %35, %39 : vector<16x256xf32>
    %c2_24 = arith.constant 2 : index
    %c0_25 = arith.constant 0 : index
    %c0_26 = arith.constant 0 : index
    %41 = vector.load %arg3[%c2_24, %c0_25, %c0_26] : memref<9x16x8xbf16, #tpu.memory_space<vmem>>, vector<1x16x8xbf16>
    %42 = vector.shape_cast %41 : vector<1x16x8xbf16> to vector<16x8xbf16>
    %43 = vector.extract_strided_slice %31 {offsets = [0, 512], sizes = [8, 256], strides = [1, 1]} : vector<8x2304xbf16> to vector<8x256xbf16>
    %cst_27 = arith.constant dense<0.000000e+00> : vector<16x256xf32>
    %44 = tpu.matmul %42, %43, %cst_27 {dimension_numbers = #tpu.dot_dimension_numbers<[1], [0], [0], [1], [0, 0, 1, 1], [], []>} : vector<16x8xbf16>, vector<8x256xbf16>, vector<16x256xf32> -> vector<16x256xf32>
    %45 = arith.addf %40, %44 : vector<16x256xf32>
    %c3_28 = arith.constant 3 : index
    %c0_29 = arith.constant 0 : index
    %c0_30 = arith.constant 0 : index
    %46 = vector.load %arg3[%c3_28, %c0_29, %c0_30] : memref<9x16x8xbf16, #tpu.memory_space<vmem>>, vector<1x16x8xbf16>
    %47 = vector.shape_cast %46 : vector<1x16x8xbf16> to vector<16x8xbf16>
    %48 = vector.extract_strided_slice %31 {offsets = [0, 768], sizes = [8, 256], strides = [1, 1]} : vector<8x2304xbf16> to vector<8x256xbf16>
    %cst_31 = arith.constant dense<0.000000e+00> : vector<16x256xf32>
    %49 = tpu.matmul %47, %48, %cst_31 {dimension_numbers = #tpu.dot_dimension_numbers<[1], [0], [0], [1], [0, 0, 1, 1], [], []>} : vector<16x8xbf16>, vector<8x256xbf16>, vector<16x256xf32> -> vector<16x256xf32>
    %50 = arith.addf %45, %49 : vector<16x256xf32>
    %c4 = arith.constant 4 : index
    %c0_32 = arith.constant 0 : index
    %c0_33 = arith.constant 0 : index
    %51 = vector.load %arg3[%c4, %c0_32, %c0_33] : memref<9x16x8xbf16, #tpu.memory_space<vmem>>, vector<1x16x8xbf16>
    %52 = vector.shape_cast %51 : vector<1x16x8xbf16> to vector<16x8xbf16>
    %53 = vector.extract_strided_slice %31 {offsets = [0, 1024], sizes = [8, 256], strides = [1, 1]} : vector<8x2304xbf16> to vector<8x256xbf16>
    %cst_34 = arith.constant dense<0.000000e+00> : vector<16x256xf32>
    %54 = tpu.matmul %52, %53, %cst_34 {dimension_numbers = #tpu.dot_dimension_numbers<[1], [0], [0], [1], [0, 0, 1, 1], [], []>} : vector<16x8xbf16>, vector<8x256xbf16>, vector<16x256xf32> -> vector<16x256xf32>
    %55 = arith.addf %50, %54 : vector<16x256xf32>
    %c5 = arith.constant 5 : index
    %c0_35 = arith.constant 0 : index
    %c0_36 = arith.constant 0 : index
    %56 = vector.load %arg3[%c5, %c0_35, %c0_36] : memref<9x16x8xbf16, #tpu.memory_space<vmem>>, vector<1x16x8xbf16>
    %57 = vector.shape_cast %56 : vector<1x16x8xbf16> to vector<16x8xbf16>
    %58 = vector.extract_strided_slice %31 {offsets = [0, 1280], sizes = [8, 256], strides = [1, 1]} : vector<8x2304xbf16> to vector<8x256xbf16>
    %cst_37 = arith.constant dense<0.000000e+00> : vector<16x256xf32>
    %59 = tpu.matmul %57, %58, %cst_37 {dimension_numbers = #tpu.dot_dimension_numbers<[1], [0], [0], [1], [0, 0, 1, 1], [], []>} : vector<16x8xbf16>, vector<8x256xbf16>, vector<16x256xf32> -> vector<16x256xf32>
    %60 = arith.addf %55, %59 : vector<16x256xf32>
    %c6 = arith.constant 6 : index
    %c0_38 = arith.constant 0 : index
    %c0_39 = arith.constant 0 : index
    %61 = vector.load %arg3[%c6, %c0_38, %c0_39] : memref<9x16x8xbf16, #tpu.memory_space<vmem>>, vector<1x16x8xbf16>
    %62 = vector.shape_cast %61 : vector<1x16x8xbf16> to vector<16x8xbf16>
    %63 = vector.extract_strided_slice %31 {offsets = [0, 1536], sizes = [8, 256], strides = [1, 1]} : vector<8x2304xbf16> to vector<8x256xbf16>
    %cst_40 = arith.constant dense<0.000000e+00> : vector<16x256xf32>
    %64 = tpu.matmul %62, %63, %cst_40 {dimension_numbers = #tpu.dot_dimension_numbers<[1], [0], [0], [1], [0, 0, 1, 1], [], []>} : vector<16x8xbf16>, vector<8x256xbf16>, vector<16x256xf32> -> vector<16x256xf32>
    %65 = arith.addf %60, %64 : vector<16x256xf32>
    %c7 = arith.constant 7 : index
    %c0_41 = arith.constant 0 : index
    %c0_42 = arith.constant 0 : index
    %66 = vector.load %arg3[%c7, %c0_41, %c0_42] : memref<9x16x8xbf16, #tpu.memory_space<vmem>>, vector<1x16x8xbf16>
    %67 = vector.shape_cast %66 : vector<1x16x8xbf16> to vector<16x8xbf16>
    %68 = vector.extract_strided_slice %31 {offsets = [0, 1792], sizes = [8, 256], strides = [1, 1]} : vector<8x2304xbf16> to vector<8x256xbf16>
    %cst_43 = arith.constant dense<0.000000e+00> : vector<16x256xf32>
    %69 = tpu.matmul %67, %68, %cst_43 {dimension_numbers = #tpu.dot_dimension_numbers<[1], [0], [0], [1], [0, 0, 1, 1], [], []>} : vector<16x8xbf16>, vector<8x256xbf16>, vector<16x256xf32> -> vector<16x256xf32>
    %70 = arith.addf %65, %69 : vector<16x256xf32>
    %c8_44 = arith.constant 8 : index
    %c0_45 = arith.constant 0 : index
    %c0_46 = arith.constant 0 : index
    %71 = vector.load %arg3[%c8_44, %c0_45, %c0_46] : memref<9x16x8xbf16, #tpu.memory_space<vmem>>, vector<1x16x8xbf16>
    %72 = vector.shape_cast %71 : vector<1x16x8xbf16> to vector<16x8xbf16>
    %73 = vector.extract_strided_slice %31 {offsets = [0, 2048], sizes = [8, 256], strides = [1, 1]} : vector<8x2304xbf16> to vector<8x256xbf16>
    %cst_47 = arith.constant dense<0.000000e+00> : vector<16x256xf32>
    %74 = tpu.matmul %72, %73, %cst_47 {dimension_numbers = #tpu.dot_dimension_numbers<[1], [0], [0], [1], [0, 0, 1, 1], [], []>} : vector<16x8xbf16>, vector<8x256xbf16>, vector<16x256xf32> -> vector<16x256xf32>
    %75 = arith.addf %70, %74 : vector<16x256xf32>
    %cst_48 = arith.constant dense<0.000000e+00> : vector<16xf32>
    %76 = vector.multi_reduction <add>, %75, %cst_48 [1] : vector<16x256xf32> to vector<16xf32>
    %77 = vector.shape_cast %76 : vector<16xf32> to vector<16x1xf32>
    %c0_49 = arith.constant 0 : index
    %c0_50 = arith.constant 0 : index
    %78 = vector.load %arg4[%c0_49, %c0_50] : memref<16x16xf32, #tpu.memory_space<vmem>>, vector<16x16xf32>
    %cst_51 = arith.constant dense<0.000000e+00> : vector<16x1xf32>
    %79 = tpu.matmul %78, %77, %cst_51 {dimension_numbers = #tpu.dot_dimension_numbers<[1], [0], [0], [1], [0, 0, 1, 1], [], []>} : vector<16x16xf32>, vector<16x1xf32>, vector<16x1xf32> -> vector<16x1xf32>
    %80 = vector.broadcast %79 : vector<16x1xf32> to vector<16x256xf32>
    %81 = arith.subf %75, %80 : vector<16x256xf32>
    %c0_52 = arith.constant 0 : index
    %c0_53 = arith.constant 0 : index
    %82 = vector.load %arg4[%c0_52, %c0_53] : memref<16x16xf32, #tpu.memory_space<vmem>>, vector<16x16xf32>
    %83 = arith.mulf %81, %81 : vector<16x256xf32>
    %cst_54 = arith.constant dense<0.000000e+00> : vector<16xf32>
    %84 = vector.multi_reduction <add>, %83, %cst_54 [1] : vector<16x256xf32> to vector<16xf32>
    %85 = vector.shape_cast %84 : vector<16xf32> to vector<16x1xf32>
    %cst_55 = arith.constant dense<0.000000e+00> : vector<16x1xf32>
    %86 = tpu.matmul %82, %85, %cst_55 {dimension_numbers = #tpu.dot_dimension_numbers<[1], [0], [0], [1], [0, 0, 1, 1], [], []>} : vector<16x16xf32>, vector<16x1xf32>, vector<16x1xf32> -> vector<16x1xf32>
    %cst_56 = arith.constant 9.99999974E-6 : f32
    %87 = vector.broadcast %cst_56 : f32 to vector<16x1xf32>
    %88 = arith.addf %86, %87 : vector<16x1xf32>
    %89 = math.rsqrt %88 : vector<16x1xf32>
    %c0_57 = arith.constant 0 : index
    %c0_58 = arith.constant 0 : index
    %90 = vector.load %arg5[%c0_57, %c0_58] : memref<16x1xf32, #tpu.memory_space<vmem>>, vector<16x1xf32>
    %91 = arith.mulf %89, %90 : vector<16x1xf32>
    %92 = vector.broadcast %91 : vector<16x1xf32> to vector<16x256xf32>
    %93 = arith.mulf %81, %92 : vector<16x256xf32>
    %c0_59 = arith.constant 0 : index
    %c0_60 = arith.constant 0 : index
    %94 = vector.load %arg6[%c0_59, %c0_60] : memref<16x1xf32, #tpu.memory_space<vmem>>, vector<16x1xf32>
    %95 = vector.broadcast %94 : vector<16x1xf32> to vector<16x256xf32>
    %96 = arith.addf %93, %95 : vector<16x256xf32>
    %cst_61 = arith.constant 0.000000e+00 : f32
    %97 = vector.broadcast %cst_61 : f32 to vector<16x256xf32>
    %98 = arith.maximumf %96, %97 : vector<16x256xf32>
    %c0_62 = arith.constant 0 : index
    %c0_63 = arith.constant 0 : index
    %c0_64 = arith.constant 0 : index
    %99 = vector.load %arg7[%c0_62, %c0_63, %c0_64] : memref<1x16x256xf32, #tpu.memory_space<vmem>>, vector<1x16x256xf32>
    %100 = vector.shape_cast %99 : vector<1x16x256xf32> to vector<16x256xf32>
    %101 = vector.shape_cast %98 : vector<16x256xf32> to vector<1x16x256xf32>
    tpu.vector_store %arg7[%c0_62, %c0_63, %c0_64], %101 {strides = array<i32>} : memref<1x16x256xf32, #tpu.memory_space<vmem>>, vector<1x16x256xf32>,
    return
  }
  func.func @transform_0(%arg0: i32) -> (i32, i32, i32) {
    %c0_i32 = arith.constant 0 : i32
    %c0_i32_0 = arith.constant 0 : i32
    %c0_i32_1 = arith.constant 0 : i32
    return %arg0, %c0_i32, %c0_i32_0 : i32, i32, i32
  }
  func.func @transform_1(%arg0: i32) -> (i32, i32, i32) {
    %c0_i32 = arith.constant 0 : i32
    %c0_i32_0 = arith.constant 0 : i32
    %c0_i32_1 = arith.constant 0 : i32
    return %arg0, %c0_i32, %c0_i32_0 : i32, i32, i32
  }
  func.func @transform_2(%arg0: i32) -> (i32, i32, i32) {
    %c0_i32 = arith.constant 0 : i32
    %c0_i32_0 = arith.constant 0 : i32
    %c0_i32_1 = arith.constant 0 : i32
    %c0_i32_2 = arith.constant 0 : i32
    return %c0_i32, %c0_i32_0, %c0_i32_1 : i32, i32, i32
  }
  func.func @transform_3(%arg0: i32) -> (i32, i32) {
    %c0_i32 = arith.constant 0 : i32
    %c0_i32_0 = arith.constant 0 : i32
    %c0_i32_1 = arith.constant 0 : i32
    return %c0_i32, %c0_i32_0 : i32, i32
  }
  func.func @transform_4(%arg0: i32) -> (i32, i32) {
    %c0_i32 = arith.constant 0 : i32
    %c0_i32_0 = arith.constant 0 : i32
    %c0_i32_1 = arith.constant 0 : i32
    return %c0_i32, %c0_i32_0 : i32, i32
  }
  func.func @transform_5(%arg0: i32) -> (i32, i32) {
    %c0_i32 = arith.constant 0 : i32
    %c0_i32_0 = arith.constant 0 : i32
    %c0_i32_1 = arith.constant 0 : i32
    return %c0_i32, %c0_i32_0 : i32, i32
  }
  func.func @transform_6(%arg0: i32) -> (i32, i32, i32) {
    %c0_i32 = arith.constant 0 : i32
    %c0_i32_0 = arith.constant 0 : i32
    %c0_i32_1 = arith.constant 0 : i32
    return %arg0, %c0_i32, %c0_i32_0 : i32, i32, i32
  }
}

</mosaic_0001>

<llo_original>
// kernel: tpu_custom_call.1
$region0: #{tpu_custom_call.1}
  #allocation0 [shape = 'u32[]', space=smem, size = 0x4, offset = 0x4, fixed_abs, tag = 'smem constant byte address 0x4 - core index']
  #allocation1 [shape = 'u32[72,128]{1,0:T(1,128)}', space=vmem, size = 0x9000, scoped, tag = 'internal scratch']
  %s0 = inlined_call_operand.hbm [shape: bf16[2,32,2304], index: 0, kind: input, shape index: {}]
  %s1 = inlined_call_operand.hbm [shape: f32[2,4,2304], index: 1, kind: input, shape index: {}]
  %s2 = inlined_call_operand.vmem [shape: bf16[9,16,8], index: 2, kind: input, shape index: {}]
  %s3 = inlined_call_operand.vmem [shape: f32[16,16], index: 3, kind: input, shape index: {}]
  %s4 = inlined_call_operand.vmem [shape: f32[16,1], index: 4, kind: input, shape index: {}]
  %s5 = inlined_call_operand.vmem [shape: f32[16,1], index: 5, kind: input, shape index: {}]
  %s6 = inlined_call_operand.hbm [shape: f32[2,16,256], index: 6, kind: output, shape index: {}]
  %s7 = sld [smem:[#allocation0]]
  $region65: #{tpu_custom_call.1} parent=0
    _
  %s9 = ssub.s32 1, %s7
  %s10 = scalar_select 0, %s9, %s7
  $region1: #{tpu_custom_call.1} parent=0
    #allocation2 [shape = 'u8[294912]{0}', space=vmem, size = 0x48000, scoped, tag = 'input window, operand 0']
    #allocation3 [shape = 's32[2]{0}', space=sflag, size = 0x8, scoped, tag = 'scoped memory for tpu_custom_call.1']
    #allocation4 [shape = 's32[2]{0}', space=sflag, size = 0x8, scoped, tag = 'scoped memory for tpu_custom_call.1']
    #allocation5 [shape = 'u8[73728]{0}', space=vmem, size = 0x12000, scoped, tag = 'input window, operand 1']
    #allocation6 [shape = 's32[2]{0}', space=sflag, size = 0x8, scoped, tag = 'scoped memory for tpu_custom_call.1']
    #allocation7 [shape = 'u8[32768]{0}', space=vmem, size = 0x8000, scoped, tag = 'output window, operand 0']
    %11 = vsyncpa [#allocation3], 0
    %s12 = scalar_lea.sflag [#allocation3], 1
    %13 = vsyncpa %s12, 0
    %14 = vsyncpa [#allocation6], 0
    %s15 = scalar_lea.sflag [#allocation6], 1
    %16 = vsyncpa %s15, 0
    %17 = vsyncpa [#allocation4], 0
    %s18 = scalar_lea.sflag [#allocation4], 1
    %19 = vsyncpa %s18, 0
    loop: start=0, step=1, limit=4
    $region2: #{tpu_custom_call.1} parent=1 // loop_pre_header
      _
    $region3: #{tpu_custom_call.1} parent=1 // loop_header
      %s21 = sphi 0, %s25
      %p22 = scmp.ge.s32.totalorder %s21, 4
      %s31 = sphi 0, %s33
      %s34 = sphi 0, %s31
      %s35 = sphi 0, %s34
      %s51 = sphi 0, %s35
      %s57 = sphi 0, %s59
      %s60 = sphi 0, %s57
      %s61 = sphi 0, %s60
      %s77 = sphi 0, %s61
      %s81 = sphi 0, %s81
      %s83 = sphi 0, %s81
      %s84 = sphi 0, %s83
      %s98 = sphi 0, %s84
      %s102 = sphi 0, %s102
      %s104 = sphi 0, %s102
      %s105 = sphi 0, %s104
      %s119 = sphi 0, %s105
      %s123 = sphi 0, %s123
      %s125 = sphi 0, %s123
      %s126 = sphi 0, %s125
      %s140 = sphi 0, %s126
      %s144 = sphi 0, %s144
      %s146 = sphi 0, %s144
      %s147 = sphi 0, %s146
      %s161 = sphi 0, %s147
      %s167 = sphi 0, %s169
      %s170 = sphi 0, %s167
      %s171 = sphi 0, %s170
      %s187 = sphi 0, %s171
    $region4: #{tpu_custom_call.1} parent=1 // loop_header_branch
      %24 = sbr.rel (%p22) target = $region8
    $region5: #{tpu_custom_call.1} parent=1 // loop_body
      %s26 = ssub.s32 %s21, 1
      %s27 = ssub.s32 %s21, 2
      %s28 = sadd.s32 %s21, 1
      %s29 = ssub.s32 %s21, %s28
      %p30 = scmp.eq.s32.totalorder %s29, 0
      %s32 = sadd.s32 %s31, 1
      %s33 = scalar_select %p30, %s31, %s32
      %p36 = pneg %p30
      %p37 = scmp.eq.s32.totalorder %s21, 1
      %p38 = por %p36, %p37
      %p39 = scmp.ne.s32.totalorder %s31, %s34
      %p40 = scmp.eq.s32.totalorder %s21, 0
      %p41 = por %p39, %p40
      %p42 = scmp.ne.s32.totalorder %s31, %s34
      %p43 = scmp.eq.s32.totalorder %s26, 1
      %p44 = por %p42, %p43
      %p45 = scmp.ne.s32.totalorder %s34, %s35
      %p46 = scmp.eq.s32.totalorder %s26, 0
      %p47 = por %p45, %p46
      %p48 = scmp.ne.s32.totalorder %s34, %s35
      %p49 = scmp.eq.s32.totalorder %s27, 1
      %p50 = por %p48, %p49
      %p52 = scmp.ne.s32.totalorder %s35, %s51
      %p53 = scmp.eq.s32.totalorder %s27, 0
      %p54 = por %p52, %p53
      %s55 = ssub.s32 %s21, %s28
      %p56 = scmp.eq.s32.totalorder %s55, 0
      %s58 = sadd.s32 %s57, 1
      %s59 = scalar_select %p56, %s57, %s58
      %p62 = pneg %p56
      %p63 = scmp.eq.s32.totalorder %s21, 1
      %p64 = por %p62, %p63
      %p65 = scmp.ne.s32.totalorder %s57, %s60
      %p66 = scmp.eq.s32.totalorder %s21, 0
      %p67 = por %p65, %p66
      %p68 = scmp.ne.s32.totalorder %s57, %s60
      %p69 = scmp.eq.s32.totalorder %s26, 1
      %p70 = por %p68, %p69
      %p71 = scmp.ne.s32.totalorder %s60, %s61
      %p72 = scmp.eq.s32.totalorder %s26, 0
      %p73 = por %p71, %p72
      %p74 = scmp.ne.s32.totalorder %s60, %s61
      %p75 = scmp.eq.s32.totalorder %s27, 1
      %p76 = por %p74, %p75
      %p78 = scmp.ne.s32.totalorder %s61, %s77
      %p79 = scmp.eq.s32.totalorder %s27, 0
      %p80 = por %p78, %p79
      %s82 = sadd.s32 %s81, 1
      %p85 = scmp.eq.s32.totalorder %s21, 1
      %p86 = scmp.ne.s32.totalorder %s81, %s83
      %p87 = scmp.eq.s32.totalorder %s21, 0
      %p88 = por %p86, %p87
      %p89 = scmp.ne.s32.totalorder %s81, %s83
      %p90 = scmp.eq.s32.totalorder %s26, 1
      %p91 = por %p89, %p90
      %p92 = scmp.ne.s32.totalorder %s83, %s84
      %p93 = scmp.eq.s32.totalorder %s26, 0
      %p94 = por %p92, %p93
      %p95 = scmp.ne.s32.totalorder %s83, %s84
      %p96 = scmp.eq.s32.totalorder %s27, 1
      %p97 = por %p95, %p96
      %p99 = scmp.ne.s32.totalorder %s84, %s98
      %p100 = scmp.eq.s32.totalorder %s27, 0
      %p101 = por %p99, %p100
      %s103 = sadd.s32 %s102, 1
      %p106 = scmp.eq.s32.totalorder %s21, 1
      %p107 = scmp.ne.s32.totalorder %s102, %s104
      %p108 = scmp.eq.s32.totalorder %s21, 0
      %p109 = por %p107, %p108
      %p110 = scmp.ne.s32.totalorder %s102, %s104
      %p111 = scmp.eq.s32.totalorder %s26, 1
      %p112 = por %p110, %p111
      %p113 = scmp.ne.s32.totalorder %s104, %s105
      %p114 = scmp.eq.s32.totalorder %s26, 0
      %p115 = por %p113, %p114
      %p116 = scmp.ne.s32.totalorder %s104, %s105
      %p117 = scmp.eq.s32.totalorder %s27, 1
      %p118 = por %p116, %p117
      %p120 = scmp.ne.s32.totalorder %s105, %s119
      %p121 = scmp.eq.s32.totalorder %s27, 0
      %p122 = por %p120, %p121
      %s124 = sadd.s32 %s123, 1
      %p127 = scmp.eq.s32.totalorder %s21, 1
      %p128 = scmp.ne.s32.totalorder %s123, %s125
      %p129 = scmp.eq.s32.totalorder %s21, 0
      %p130 = por %p128, %p129
      %p131 = scmp.ne.s32.totalorder %s123, %s125
      %p132 = scmp.eq.s32.totalorder %s26, 1
      %p133 = por %p131, %p132
      %p134 = scmp.ne.s32.totalorder %s125, %s126
      %p135 = scmp.eq.s32.totalorder %s26, 0
      %p136 = por %p134, %p135
      %p137 = scmp.ne.s32.totalorder %s125, %s126
      %p138 = scmp.eq.s32.totalorder %s27, 1
      %p139 = por %p137, %p138
      %p141 = scmp.ne.s32.totalorder %s126, %s140
      %p142 = scmp.eq.s32.totalorder %s27, 0
      %p143 = por %p141, %p142
      %s145 = sadd.s32 %s144, 1
      %p148 = scmp.eq.s32.totalorder %s21, 1
      %p149 = scmp.ne.s32.totalorder %s144, %s146
      %p150 = scmp.eq.s32.totalorder %s21, 0
      %p151 = por %p149, %p150
      %p152 = scmp.ne.s32.totalorder %s144, %s146
      %p153 = scmp.eq.s32.totalorder %s26, 1
      %p154 = por %p152, %p153
      %p155 = scmp.ne.s32.totalorder %s146, %s147
      %p156 = scmp.eq.s32.totalorder %s26, 0
      %p157 = por %p155, %p156
      %p158 = scmp.ne.s32.totalorder %s146, %s147
      %p159 = scmp.eq.s32.totalorder %s27, 1
      %p160 = por %p158, %p159
      %p162 = scmp.ne.s32.totalorder %s147, %s161
      %p163 = scmp.eq.s32.totalorder %s27, 0
      %p164 = por %p162, %p163
      %s165 = ssub.s32 %s21, %s28
      %p166 = scmp.eq.s32.totalorder %s165, 0
      %s168 = sadd.s32 %s167, 1
      %s169 = scalar_select %p166, %s167, %s168
      %p172 = pneg %p166
      %p173 = scmp.eq.s32.totalorder %s21, 1
      %p174 = por %p172, %p173
      %p175 = scmp.ne.s32.totalorder %s167, %s170
      %p176 = scmp.eq.s32.totalorder %s21, 0
      %p177 = por %p175, %p176
      %p178 = scmp.ne.s32.totalorder %s167, %s170
      %p179 = scmp.eq.s32.totalorder %s26, 1
      %p180 = por %p178, %p179
      %p181 = scmp.ne.s32.totalorder %s170, %s171
      %p182 = scmp.eq.s32.totalorder %s26, 0
      %p183 = por %p181, %p182
      %p184 = scmp.ne.s32.totalorder %s170, %s171
      %p185 = scmp.eq.s32.totalorder %s27, 1
      %p186 = por %p184, %p185
      %p188 = scmp.ne.s32.totalorder %s171, %s187
      %p189 = scmp.eq.s32.totalorder %s27, 0
      %p190 = por %p188, %p189
      %p191 = scmp.le.s32.totalorder 1, %s21
      %p192 = scmp.lt.s32.totalorder %s21, 3
      %p193 = pnand %p191, %p192
      %p194 = pneg %p193
      // Predicated region
      $region9: #{tpu_custom_call.1} parent=5 // pred_check
        _
      $region10: #{tpu_custom_call.1} parent=5 // pred_check_branch
        %196 = sbr.rel (%p193) target = $region12
      $region11: #{tpu_custom_call.1} parent=5 // pred_region
        %s197 = ssub.s32 %s21, 1
        // Predicated region
        $region13: #{tpu_custom_call.1} parent=11 // pred_check
          %p198 = pneg %p94
        $region14: #{tpu_custom_call.1} parent=11 // pred_check_branch
          %200 = sbr.rel (%p198) target = $region16
        $region15: #{tpu_custom_call.1} parent=11 // pred_region
          _
        $region16: #{tpu_custom_call.1} parent=11 // pred_fallthru
          _
        // Predicated region
        $region17: #{tpu_custom_call.1} parent=11 // pred_check
          %p201 = pneg %p115
        $region18: #{tpu_custom_call.1} parent=11 // pred_check_branch
          %203 = sbr.rel (%p201) target = $region20
        $region19: #{tpu_custom_call.1} parent=11 // pred_region
          _
        $region20: #{tpu_custom_call.1} parent=11 // pred_fallthru
          _
        // Predicated region
        $region21: #{tpu_custom_call.1} parent=11 // pred_check
          %p204 = pneg %p136
        $region22: #{tpu_custom_call.1} parent=11 // pred_check_branch
          %206 = sbr.rel (%p204) target = $region24
        $region23: #{tpu_custom_call.1} parent=11 // pred_region
          _
        $region24: #{tpu_custom_call.1} parent=11 // pred_fallthru
          _
        // Predicated region
        $region25: #{tpu_custom_call.1} parent=11 // pred_check
          %p207 = pneg %p157
        $region26: #{tpu_custom_call.1} parent=11 // pred_check_branch
          %209 = sbr.rel (%p207) target = $region28
        $region27: #{tpu_custom_call.1} parent=11 // pred_region
          _
        $region28: #{tpu_custom_call.1} parent=11 // pred_fallthru
          _
      $region12: #{tpu_custom_call.1} parent=5 // pred_fallthru
        _
      %p210 = scmp.lt.s32.totalorder %s21, 2
      // Predicated region
      $region29: #{tpu_custom_call.1} parent=5 // pred_check
        %p211 = pneg %p210
      $region30: #{tpu_custom_call.1} parent=5 // pred_check_branch
        %213 = sbr.rel (%p211) target = $region32
      $region31: #{tpu_custom_call.1} parent=5 // pred_region
        // Predicated region
        $region33: #{tpu_custom_call.1} parent=31 // pred_check
          %p214 = pneg %p41
        $region34: #{tpu_custom_call.1} parent=31 // pred_check_branch
          %216 = sbr.rel (%p214) target = $region36
        $region35: #{tpu_custom_call.1} parent=31 // pred_region
          %s217 = sand.u32 %s31, 1
          %s218 = scalar_lea.sflag [#allocation3], %s217
          %s219 = sand.u32 %s31, 1
          %s220 = smul.addr %s219, 288
          %s221 = scalar_lea.vmem [#allocation2], %s220
          %223 = vsyncadd %s218, 0
          %s224 = smul.addr %s21, 72
          %s225 = smul.addr %s224, 4
          %s226 = scalar_lea.hbm %s0, %s225
          %s227 = sshll.u32 %s226, 4
          %s228 = int_to_ptr.hbm [resolvable:$true] %s227
          %s229 = sshll.u32 %s221, 4
          %s230 = int_to_ptr.vmem [resolvable:$true] %s229
          %235 = dma.hbm_to_vmem [thread:$0]  %s228, 4608, %s230, %s218, 1152, 1152, 72
        $region36: #{tpu_custom_call.1} parent=31 // pred_fallthru
          _
        // Predicated region
        $region37: #{tpu_custom_call.1} parent=31 // pred_check
          %p236 = pneg %p67
        $region38: #{tpu_custom_call.1} parent=31 // pred_check_branch
          %238 = sbr.rel (%p236) target = $region40
        $region39: #{tpu_custom_call.1} parent=31 // pred_region
          %s239 = sand.u32 %s57, 1
          %s240 = scalar_lea.sflag [#allocation6], %s239
          %s241 = sand.u32 %s57, 1
          %s242 = smul.addr %s241, 72
          %s243 = scalar_lea.vmem [#allocation5], %s242
          %245 = vsyncadd %s240, 0
          %s246 = smul.addr %s21, 18
          %s247 = smul.addr %s246, 4
          %s248 = scalar_lea.hbm %s1, %s247
          %s250 = sshll.u32 %s248, 4
          %s251 = int_to_ptr.hbm [resolvable:$true] %s250
          %s252 = sshll.u32 %s243, 4
          %s253 = int_to_ptr.vmem [resolvable:$true] %s252
          %255 = dma.hbm_to_vmem [thread:$0]  %s251, 1152, %s253, %s240
        $region40: #{tpu_custom_call.1} parent=31 // pred_fallthru
          _
      $region32: #{tpu_custom_call.1} parent=5 // pred_fallthru
        _
      %p256 = scmp.le.s32.totalorder 1, %s21
      %p257 = scmp.lt.s32.totalorder %s21, 3
      %p258 = pnand %p256, %p257
      %p259 = pneg %p258
      // Predicated region
      $region41: #{tpu_custom_call.1} parent=5 // pred_check
        _
      $region42: #{tpu_custom_call.1} parent=5 // pred_check_branch
        %261 = sbr.rel (%p258) target = $region44
      $region43: #{tpu_custom_call.1} parent=5 // pred_region
        %s262 = ssub.s32 %s21, 1
        %s263 = sand.u32 %s34, 1
        %s264 = scalar_lea.sflag [#allocation3], %s263
        %s265 = sand.u32 %s34, 1
        %s266 = smul.addr %s265, 288
        %s267 = scalar_lea.vmem [#allocation2], %s266
        // Predicated region
        $region45: #{tpu_custom_call.1} parent=43 // pred_check
          %p268 = pneg %p47
        $region46: #{tpu_custom_call.1} parent=43 // pred_check_branch
          %270 = sbr.rel (%p268) target = $region48
        $region47: #{tpu_custom_call.1} parent=43 // pred_region
          %272 = dma.done %s264, 4608
        $region48: #{tpu_custom_call.1} parent=43 // pred_fallthru
          _
        %s273 = sand.u32 %s60, 1
        %s274 = scalar_lea.sflag [#allocation6], %s273
        %s275 = sand.u32 %s60, 1
        %s276 = smul.addr %s275, 72
        %s277 = scalar_lea.vmem [#allocation5], %s276
        // Predicated region
        $region49: #{tpu_custom_call.1} parent=43 // pred_check
          %p278 = pneg %p73
        $region50: #{tpu_custom_call.1} parent=43 // pred_check_branch
          %280 = sbr.rel (%p278) target = $region52
        $region51: #{tpu_custom_call.1} parent=43 // pred_region
          %282 = dma.done %s274, 1152
        $region52: #{tpu_custom_call.1} parent=43 // pred_fallthru
          _
        %s283 = sand.u32 %s34, 1
        %s284 = scalar_lea.sflag [#allocation3], %s283
        %s285 = sand.u32 %s34, 1
        %s286 = smul.addr %s285, 288
        %s287 = scalar_lea.vmem [#allocation2], %s286
        %p288 = pneg %p47
        %p289 = pneg %p44
        %s290 = sand.u32 %s60, 1
        %s291 = scalar_lea.sflag [#allocation6], %s290
        %s292 = sand.u32 %s60, 1
        %s293 = smul.addr %s292, 72
        %s294 = scalar_lea.vmem [#allocation5], %s293
        %p295 = pneg %p73
        %p296 = pneg %p70
        %p297 = pneg %p94
        %p298 = pneg %p91
        %p299 = pneg %p115
        %p300 = pneg %p112
        %p301 = pneg %p136
        %p302 = pneg %p133
        %p303 = pneg %p157
        %p304 = pneg %p154
        %p305 = pneg %p183
        %p306 = pneg %p180
        %s307 = sand.u32 %s170, 1
        %s308 = scalar_lea.sflag [#allocation4], %s307
        %s309 = sand.u32 %s170, 1
        %s310 = smul.addr %s309, 32
        %s311 = scalar_lea.vmem [#allocation7], %s310
        %v313 = vld [vmem:[%s267] sm:$0xff]
        %v314 = vld [vmem:[%s267 + $0x8] sm:$0xff]
        %v315 = vld [vmem:[%s267 + $0x10] sm:$0xff]
        %v316 = vld [vmem:[%s267 + $0x18] sm:$0xff]
        %v317 = vld [vmem:[%s267 + $0x20] sm:$0xff]
        %v318 = vld [vmem:[%s267 + $0x28] sm:$0xff]
        %v319 = vld [vmem:[%s267 + $0x30] sm:$0xff]
        %v320 = vld [vmem:[%s267 + $0x38] sm:$0xff]
        %v321 = vld [vmem:[%s267 + $0x40] sm:$0xff]
        %v322 = vunpack.c.l.bf16 %v313
        %v323 = vunpack.c.h.bf16 %v313
        %v324 = vunpack.c.l.bf16 %v314
        %v325 = vunpack.c.h.bf16 %v314
        %v326 = vunpack.c.l.bf16 %v315
        %v327 = vunpack.c.h.bf16 %v315
        %v328 = vunpack.c.l.bf16 %v316
        %v329 = vunpack.c.h.bf16 %v316
        %v330 = vunpack.c.l.bf16 %v317
        %v331 = vunpack.c.h.bf16 %v317
        %v332 = vunpack.c.l.bf16 %v318
        %v333 = vunpack.c.h.bf16 %v318
        %v334 = vunpack.c.l.bf16 %v319
        %v335 = vunpack.c.h.bf16 %v319
        %v336 = vunpack.c.l.bf16 %v320
        %v337 = vunpack.c.h.bf16 %v320
        %v338 = vunpack.c.l.bf16 %v321
        %v339 = vunpack.c.h.bf16 %v321
        %v340 = vld [vmem:[%s277] ss:$4 sm:$0xff]
        %s341 = scalar_lea.vmem %s277, 32 [#allocation5]
        %v342 = vld [vmem:[%s341] ss:$4 sm:$0xff]
        %s343 = scalar_lea.vmem %s277, 64 [#allocation5]
        %v344 = vld [vmem:[%s343] ss:$4 sm:$0x3]
        %v348 = vperm.slane %v340, 0
        %v349 = vperm.slane %v340, 1
        %v350 = vperm.slane %v340, 2
        %v351 = vperm.slane %v340, 3
        %v352 = vperm.slane %v340, 4
        %v353 = vperm.slane %v340, 5
        %v354 = vperm.slane %v340, 6
        %v355 = vperm.slane %v340, 7
        %v356 = vperm.slane %v342, 0
        %v357 = vperm.slane %v342, 1
        %v358 = vperm.slane %v342, 2
        %v359 = vperm.slane %v342, 3
        %v360 = vperm.slane %v342, 4
        %v361 = vperm.slane %v342, 5
        %v362 = vperm.slane %v342, 6
        %v363 = vperm.slane %v342, 7
        %v364 = vperm.slane %v344, 0
        %v365 = vperm.slane %v344, 1
        %v384 = vmul.f32 %v322, %v348
        %v385 = vmul.f32 %v323, %v349
        %v386 = vmul.f32 %v324, %v350
        %v387 = vmul.f32 %v325, %v351
        %v388 = vmul.f32 %v326, %v352
        %v389 = vmul.f32 %v327, %v353
        %v390 = vmul.f32 %v328, %v354
        %v391 = vmul.f32 %v329, %v355
        %v392 = vmul.f32 %v330, %v356
        %v393 = vmul.f32 %v331, %v357
        %v394 = vmul.f32 %v332, %v358
        %v395 = vmul.f32 %v333, %v359
        %v396 = vmul.f32 %v334, %v360
        %v397 = vmul.f32 %v335, %v361
        %v398 = vmul.f32 %v336, %v362
        %v399 = vmul.f32 %v337, %v363
        %v400 = vmul.f32 %v338, %v364
        %v401 = vmul.f32 %v339, %v365
        %v402 = vld [vmem:[%s267 + $0x48] sm:$0xff]
        %v403 = vld [vmem:[%s267 + $0x50] sm:$0xff]
        %v404 = vld [vmem:[%s267 + $0x58] sm:$0xff]
        %v405 = vld [vmem:[%s267 + $0x60] sm:$0xff]
        %v406 = vld [vmem:[%s267 + $0x68] sm:$0xff]
        %v407 = vld [vmem:[%s267 + $0x70] sm:$0xff]
        %v408 = vld [vmem:[%s267 + $0x78] sm:$0xff]
        %v409 = vld [vmem:[%s267 + $0x80] sm:$0xff]
        %v410 = vld [vmem:[%s267 + $0x88] sm:$0xff]
        %v411 = vunpack.c.l.bf16 %v402
        %v412 = vunpack.c.h.bf16 %v402
        %v413 = vunpack.c.l.bf16 %v403
        %v414 = vunpack.c.h.bf16 %v403
        %v415 = vunpack.c.l.bf16 %v404
        %v416 = vunpack.c.h.bf16 %v404
        %v417 = vunpack.c.l.bf16 %v405
        %v418 = vunpack.c.h.bf16 %v405
        %v419 = vunpack.c.l.bf16 %v406
        %v420 = vunpack.c.h.bf16 %v406
        %v421 = vunpack.c.l.bf16 %v407
        %v422 = vunpack.c.h.bf16 %v407
        %v423 = vunpack.c.l.bf16 %v408
        %v424 = vunpack.c.h.bf16 %v408
        %v425 = vunpack.c.l.bf16 %v409
        %v426 = vunpack.c.h.bf16 %v409
        %v427 = vunpack.c.l.bf16 %v410
        %v428 = vunpack.c.h.bf16 %v410
        %s429 = scalar_lea.vmem %s277, 1 [#allocation5]
        %v430 = vld [vmem:[%s429] ss:$4 sm:$0xff]
        %s431 = scalar_lea.vmem %s277, 33 [#allocation5]
        %v432 = vld [vmem:[%s431] ss:$4 sm:$0xff]
        %s433 = scalar_lea.vmem %s277, 65 [#allocation5]
        %v434 = vld [vmem:[%s433] ss:$4 sm:$0x3]
        %v438 = vperm.slane %v430, 0
        %v439 = vperm.slane %v430, 1
        %v440 = vperm.slane %v430, 2
        %v441 = vperm.slane %v430, 3
        %v442 = vperm.slane %v430, 4
        %v443 = vperm.slane %v430, 5
        %v444 = vperm.slane %v430, 6
        %v445 = vperm.slane %v430, 7
        %v446 = vperm.slane %v432, 0
        %v447 = vperm.slane %v432, 1
        %v448 = vperm.slane %v432, 2
        %v449 = vperm.slane %v432, 3
        %v450 = vperm.slane %v432, 4
        %v451 = vperm.slane %v432, 5
        %v452 = vperm.slane %v432, 6
        %v453 = vperm.slane %v432, 7
        %v454 = vperm.slane %v434, 0
        %v455 = vperm.slane %v434, 1
        %v474 = vmul.f32 %v411, %v438
        %v475 = vmul.f32 %v412, %v439
        %v476 = vmul.f32 %v413, %v440
        %v477 = vmul.f32 %v414, %v441
        %v478 = vmul.f32 %v415, %v442
        %v479 = vmul.f32 %v416, %v443
        %v480 = vmul.f32 %v417, %v444
        %v481 = vmul.f32 %v418, %v445
        %v482 = vmul.f32 %v419, %v446
        %v483 = vmul.f32 %v420, %v447
        %v484 = vmul.f32 %v421, %v448
        %v485 = vmul.f32 %v422, %v449
        %v486 = vmul.f32 %v423, %v450
        %v487 = vmul.f32 %v424, %v451
        %v488 = vmul.f32 %v425, %v452
        %v489 = vmul.f32 %v426, %v453
        %v490 = vmul.f32 %v427, %v454
        %v491 = vmul.f32 %v428, %v455
        %v492 = vadd.f32 %v384, %v474
        %v493 = vadd.f32 %v385, %v475
        %v494 = vadd.f32 %v386, %v476
        %v495 = vadd.f32 %v387, %v477
        %v496 = vadd.f32 %v388, %v478
        %v497 = vadd.f32 %v389, %v479
        %v498 = vadd.f32 %v390, %v480
        %v499 = vadd.f32 %v391, %v481
        %v500 = vadd.f32 %v392, %v482
        %v501 = vadd.f32 %v393, %v483
        %v502 = vadd.f32 %v394, %v484
        %v503 = vadd.f32 %v395, %v485
        %v504 = vadd.f32 %v396, %v486
        %v505 = vadd.f32 %v397, %v487
        %v506 = vadd.f32 %v398, %v488
        %v507 = vadd.f32 %v399, %v489
        %v508 = vadd.f32 %v400, %v490
        %v509 = vadd.f32 %v401, %v491
        %v510 = vld [vmem:[%s267 + $0x90] sm:$0xff]
        %v511 = vld [vmem:[%s267 + $0x98] sm:$0xff]
        %v512 = vld [vmem:[%s267 + $0xa0] sm:$0xff]
        %v513 = vld [vmem:[%s267 + $0xa8] sm:$0xff]
        %v514 = vld [vmem:[%s267 + $0xb0] sm:$0xff]
        %v515 = vld [vmem:[%s267 + $0xb8] sm:$0xff]
        %v516 = vld [vmem:[%s267 + $0xc0] sm:$0xff]
        %v517 = vld [vmem:[%s267 + $0xc8] sm:$0xff]
        %v518 = vld [vmem:[%s267 + $0xd0] sm:$0xff]
        %v519 = vunpack.c.l.bf16 %v510
        %v520 = vunpack.c.h.bf16 %v510
        %v521 = vunpack.c.l.bf16 %v511
        %v522 = vunpack.c.h.bf16 %v511
        %v523 = vunpack.c.l.bf16 %v512
        %v524 = vunpack.c.h.bf16 %v512
        %v525 = vunpack.c.l.bf16 %v513
        %v526 = vunpack.c.h.bf16 %v513
        %v527 = vunpack.c.l.bf16 %v514
        %v528 = vunpack.c.h.bf16 %v514
        %v529 = vunpack.c.l.bf16 %v515
        %v530 = vunpack.c.h.bf16 %v515
        %v531 = vunpack.c.l.bf16 %v516
        %v532 = vunpack.c.h.bf16 %v516
        %v533 = vunpack.c.l.bf16 %v517
        %v534 = vunpack.c.h.bf16 %v517
        %v535 = vunpack.c.l.bf16 %v518
        %v536 = vunpack.c.h.bf16 %v518
        %s537 = scalar_lea.vmem %s277, 2 [#allocation5]
        %v538 = vld [vmem:[%s537] ss:$4 sm:$0xff]
        %s539 = scalar_lea.vmem %s277, 34 [#allocation5]
        %v540 = vld [vmem:[%s539] ss:$4 sm:$0xff]
        %s541 = scalar_lea.vmem %s277, 66 [#allocation5]
        %v542 = vld [vmem:[%s541] ss:$4 sm:$0x3]
        %v546 = vperm.slane %v538, 0
        %v547 = vperm.slane %v538, 1
        %v548 = vperm.slane %v538, 2
        %v549 = vperm.slane %v538, 3
        %v550 = vperm.slane %v538, 4
        %v551 = vperm.slane %v538, 5
        %v552 = vperm.slane %v538, 6
        %v553 = vperm.slane %v538, 7
        %v554 = vperm.slane %v540, 0
        %v555 = vperm.slane %v540, 1
        %v556 = vperm.slane %v540, 2
        %v557 = vperm.slane %v540, 3
        %v558 = vperm.slane %v540, 4
        %v559 = vperm.slane %v540, 5
        %v560 = vperm.slane %v540, 6
        %v561 = vperm.slane %v540, 7
        %v562 = vperm.slane %v542, 0
        %v563 = vperm.slane %v542, 1
        %v582 = vmul.f32 %v519, %v546
        %v583 = vmul.f32 %v520, %v547
        %v584 = vmul.f32 %v521, %v548
        %v585 = vmul.f32 %v522, %v549
        %v586 = vmul.f32 %v523, %v550
        %v587 = vmul.f32 %v524, %v551
        %v588 = vmul.f32 %v525, %v552
        %v589 = vmul.f32 %v526, %v553
        %v590 = vmul.f32 %v527, %v554
        %v591 = vmul.f32 %v528, %v555
        %v592 = vmul.f32 %v529, %v556
        %v593 = vmul.f32 %v530, %v557
        %v594 = vmul.f32 %v531, %v558
        %v595 = vmul.f32 %v532, %v559
        %v596 = vmul.f32 %v533, %v560
        %v597 = vmul.f32 %v534, %v561
        %v598 = vmul.f32 %v535, %v562
        %v599 = vmul.f32 %v536, %v563
        %v600 = vadd.f32 %v492, %v582
        %v601 = vadd.f32 %v493, %v583
        %v602 = vadd.f32 %v494, %v584
        %v603 = vadd.f32 %v495, %v585
        %v604 = vadd.f32 %v496, %v586
        %v605 = vadd.f32 %v497, %v587
        %v606 = vadd.f32 %v498, %v588
        %v607 = vadd.f32 %v499, %v589
        %v608 = vadd.f32 %v500, %v590
        %v609 = vadd.f32 %v501, %v591
        %v610 = vadd.f32 %v502, %v592
        %v611 = vadd.f32 %v503, %v593
        %v612 = vadd.f32 %v504, %v594
        %v613 = vadd.f32 %v505, %v595
        %v614 = vadd.f32 %v506, %v596
        %v615 = vadd.f32 %v507, %v597
        %v616 = vadd.f32 %v508, %v598
        %v617 = vadd.f32 %v509, %v599
        %v618 = vld [vmem:[%s267 + $0xd8] sm:$0xff]
        %v619 = vld [vmem:[%s267 + $0xe0] sm:$0xff]
        %v620 = vld [vmem:[%s267 + $0xe8] sm:$0xff]
        %v621 = vld [vmem:[%s267 + $0xf0] sm:$0xff]
        %v622 = vld [vmem:[%s267 + $0xf8] sm:$0xff]
        %v623 = vld [vmem:[%s267 + $0x100] sm:$0xff]
        %v624 = vld [vmem:[%s267 + $0x108] sm:$0xff]
        %v625 = vld [vmem:[%s267 + $0x110] sm:$0xff]
        %v626 = vld [vmem:[%s267 + $0x118] sm:$0xff]
        %v627 = vunpack.c.l.bf16 %v618
        %v628 = vunpack.c.h.bf16 %v618
        %v629 = vunpack.c.l.bf16 %v619
        %v630 = vunpack.c.h.bf16 %v619
        %v631 = vunpack.c.l.bf16 %v620
        %v632 = vunpack.c.h.bf16 %v620
        %v633 = vunpack.c.l.bf16 %v621
        %v634 = vunpack.c.h.bf16 %v621
        %v635 = vunpack.c.l.bf16 %v622
        %v636 = vunpack.c.h.bf16 %v622
        %v637 = vunpack.c.l.bf16 %v623
        %v638 = vunpack.c.h.bf16 %v623
        %v639 = vunpack.c.l.bf16 %v624
        %v640 = vunpack.c.h.bf16 %v624
        %v641 = vunpack.c.l.bf16 %v625
        %v642 = vunpack.c.h.bf16 %v625
        %v643 = vunpack.c.l.bf16 %v626
        %v644 = vunpack.c.h.bf16 %v626
        %s645 = scalar_lea.vmem %s277, 3 [#allocation5]
        %v646 = vld [vmem:[%s645] ss:$4 sm:$0xff]
        %s647 = scalar_lea.vmem %s277, 35 [#allocation5]
        %v648 = vld [vmem:[%s647] ss:$4 sm:$0xff]
        %s649 = scalar_lea.vmem %s277, 67 [#allocation5]
        %v650 = vld [vmem:[%s649] ss:$4 sm:$0x3]
        %v654 = vperm.slane %v646, 0
        %v655 = vperm.slane %v646, 1
        %v656 = vperm.slane %v646, 2
        %v657 = vperm.slane %v646, 3
        %v658 = vperm.slane %v646, 4
        %v659 = vperm.slane %v646, 5
        %v660 = vperm.slane %v646, 6
        %v661 = vperm.slane %v646, 7
        %v662 = vperm.slane %v648, 0
        %v663 = vperm.slane %v648, 1
        %v664 = vperm.slane %v648, 2
        %v665 = vperm.slane %v648, 3
        %v666 = vperm.slane %v648, 4
        %v667 = vperm.slane %v648, 5
        %v668 = vperm.slane %v648, 6
        %v669 = vperm.slane %v648, 7
        %v670 = vperm.slane %v650, 0
        %v671 = vperm.slane %v650, 1
        %v690 = vmul.f32 %v627, %v654
        %v691 = vmul.f32 %v628, %v655
        %v692 = vmul.f32 %v629, %v656
        %v693 = vmul.f32 %v630, %v657
        %v694 = vmul.f32 %v631, %v658
        %v695 = vmul.f32 %v632, %v659
        %v696 = vmul.f32 %v633, %v660
        %v697 = vmul.f32 %v634, %v661
        %v698 = vmul.f32 %v635, %v662
        %v699 = vmul.f32 %v636, %v663
        %v700 = vmul.f32 %v637, %v664
        %v701 = vmul.f32 %v638, %v665
        %v702 = vmul.f32 %v639, %v666
        %v703 = vmul.f32 %v640, %v667
        %v704 = vmul.f32 %v641, %v668
        %v705 = vmul.f32 %v642, %v669
        %v706 = vmul.f32 %v643, %v670
        %v707 = vmul.f32 %v644, %v671
        %v708 = vadd.f32 %v600, %v690
        %v709 = vadd.f32 %v601, %v691
        %v710 = vadd.f32 %v602, %v692
        %v711 = vadd.f32 %v603, %v693
        %v712 = vadd.f32 %v604, %v694
        %v713 = vadd.f32 %v605, %v695
        %v714 = vadd.f32 %v606, %v696
        %v715 = vadd.f32 %v607, %v697
        %v716 = vadd.f32 %v608, %v698
        %v717 = vadd.f32 %v609, %v699
        %v718 = vadd.f32 %v610, %v700
        %v719 = vadd.f32 %v611, %v701
        %v720 = vadd.f32 %v612, %v702
        %v721 = vadd.f32 %v613, %v703
        %v722 = vadd.f32 %v614, %v704
        %v723 = vadd.f32 %v615, %v705
        %v724 = vadd.f32 %v616, %v706
        %v725 = vadd.f32 %v617, %v707
        %v726 = vpack.c.bf16 %v709, %v708
        %v727 = vpack.c.bf16 %v711, %v710
        %v728 = vpack.c.bf16 %v713, %v712
        %v729 = vpack.c.bf16 %v715, %v714
        %v730 = vpack.c.bf16 %v717, %v716
        %v731 = vpack.c.bf16 %v719, %v718
        %v732 = vpack.c.bf16 %v721, %v720
        %v733 = vpack.c.bf16 %v723, %v722
        %v734 = vpack.c.bf16 %v725, %v724
        %v735 = vld [vmem:[%s2] sm:$0xf]
        %v736 = vld [vmem:[%s2 + $0x4] sm:$0xf]
        %s737 = scalar_lea.vmem %s2, 8
        %v738 = vld [vmem:[%s737] sm:$0xf]
        %v739 = vld [vmem:[%s737 + $0x4] sm:$0xf]
        %v742 = vunpack.c.l.b16 %v738
        %v743 = vunpack.c.l.b16 %v739
        %v744 = vpack.c.b16 %v743, %v742
        %v746 = vunpack.c.l.b16 %v727
        %v747 = vunpack.c.h.b16 %v727
        %v748 = vpack.c.b16 %v746, %v746
        %v749 = vpack.c.b16 %v747, %v747
        %vm750 = vcmask 64512
        %v752 = vsel %vm750, %v744, 0
        %vm754 = vcmask 1043456
        %v756 = vsel %vm754, %v748, 0
        %v759 = vsel %vm754, %v749, 0
        %761 = vmatpush.bf16.msra.mxu0 0
        %762 = vmatpush.bf16.msra.mxu0 0
        %763 = vmatpush.bf16.msra.mxu0 0
        %764 = vmatpush.bf16.msra.mxu0 0
        %765 = vmatpush.bf16.msra.mxu0 0
        %766 = vmatpush.bf16.msra.mxu0 0
        %767 = vmatpush.bf16.msra.mxu0 0
        %768 = vmatpush.bf16.msra.mxu0 %v756
        %769 = vmatmul.bf16.gmra.mxu0 %v752
        %v770 = vpop.f32.mrf.mxu0
        %v771 = vadd.f32 0.0, %v770
        %v772 = vpop.f32.mrf.mxu0
        %v773 = vadd.f32 0.0, %v772
        %774 = vdwg.mxu0
        %775 = vmatpush.bf16.msra.mxu0 0
        %776 = vmatpush.bf16.msra.mxu0 0
        %777 = vmatpush.bf16.msra.mxu0 0
        %778 = vmatpush.bf16.msra.mxu0 0
        %779 = vmatpush.bf16.msra.mxu0 0
        %780 = vmatpush.bf16.msra.mxu0 0
        %781 = vmatpush.bf16.msra.mxu0 0
        %782 = vmatpush.bf16.msra.mxu0 %v759
        %783 = vmatmul.bf16.gmra.mxu0 %v752
        %v784 = vpop.f32.mrf.mxu0
        %v785 = vadd.f32 0.0, %v784
        %v786 = vpop.f32.mrf.mxu0
        %v787 = vadd.f32 0.0, %v786
        %788 = vdwg.mxu0
        %v791 = vunpack.c.l.b16 %v735
        %v792 = vunpack.c.l.b16 %v736
        %v793 = vpack.c.b16 %v792, %v791
        %v795 = vunpack.c.l.b16 %v726
        %v796 = vunpack.c.h.b16 %v726
        %v797 = vpack.c.b16 %v795, %v795
        %v798 = vpack.c.b16 %v796, %v796
        %v800 = vsel %vm750, %v793, 0
        %v803 = vsel %vm754, %v797, 0
        %v806 = vsel %vm754, %v798, 0
        %808 = vmatpush.bf16.msra.mxu0 0
        %809 = vmatpush.bf16.msra.mxu0 0
        %810 = vmatpush.bf16.msra.mxu0 0
        %811 = vmatpush.bf16.msra.mxu0 0
        %812 = vmatpush.bf16.msra.mxu0 0
        %813 = vmatpush.bf16.msra.mxu0 0
        %814 = vmatpush.bf16.msra.mxu0 0
        %815 = vmatpush.bf16.msra.mxu0 %v803
        %816 = vmatmul.bf16.gmra.mxu0 %v800
        %v817 = vpop.f32.mrf.mxu0
        %v818 = vadd.f32 %v771, %v817
        %v819 = vpop.f32.mrf.mxu0
        %v820 = vadd.f32 %v773, %v819
        %821 = vdwg.mxu0
        %822 = vmatpush.bf16.msra.mxu0 0
        %823 = vmatpush.bf16.msra.mxu0 0
        %824 = vmatpush.bf16.msra.mxu0 0
        %825 = vmatpush.bf16.msra.mxu0 0
        %826 = vmatpush.bf16.msra.mxu0 0
        %827 = vmatpush.bf16.msra.mxu0 0
        %828 = vmatpush.bf16.msra.mxu0 0
        %829 = vmatpush.bf16.msra.mxu0 %v806
        %830 = vmatmul.bf16.gmra.mxu0 %v800
        %v831 = vpop.f32.mrf.mxu0
        %v832 = vadd.f32 %v785, %v831
        %v833 = vpop.f32.mrf.mxu0
        %v834 = vadd.f32 %v787, %v833
        %835 = vdwg.mxu0
        %s836 = scalar_lea.vmem %s2, 16
        %v837 = vld [vmem:[%s836] sm:$0xf]
        %v838 = vld [vmem:[%s836 + $0x4] sm:$0xf]
        %v841 = vunpack.c.l.b16 %v837
        %v842 = vunpack.c.l.b16 %v838
        %v843 = vpack.c.b16 %v842, %v841
        %v845 = vunpack.c.l.b16 %v728
        %v846 = vunpack.c.h.b16 %v728
        %v847 = vpack.c.b16 %v845, %v845
        %v848 = vpack.c.b16 %v846, %v846
        %v850 = vsel %vm750, %v843, 0
        %v853 = vsel %vm754, %v847, 0
        %v856 = vsel %vm754, %v848, 0
        %858 = vmatpush.bf16.msra.mxu0 0
        %859 = vmatpush.bf16.msra.mxu0 0
        %860 = vmatpush.bf16.msra.mxu0 0
        %861 = vmatpush.bf16.msra.mxu0 0
        %862 = vmatpush.bf16.msra.mxu0 0
        %863 = vmatpush.bf16.msra.mxu0 0
        %864 = vmatpush.bf16.msra.mxu0 0
        %865 = vmatpush.bf16.msra.mxu0 %v853
        %866 = vmatmul.bf16.gmra.mxu0 %v850
        %v867 = vpop.f32.mrf.mxu0
        %v868 = vadd.f32 0.0, %v867
        %v869 = vpop.f32.mrf.mxu0
        %v870 = vadd.f32 0.0, %v869
        %871 = vdwg.mxu0
        %872 = vmatpush.bf16.msra.mxu0 0
        %873 = vmatpush.bf16.msra.mxu0 0
        %874 = vmatpush.bf16.msra.mxu0 0
        %875 = vmatpush.bf16.msra.mxu0 0
        %876 = vmatpush.bf16.msra.mxu0 0
        %877 = vmatpush.bf16.msra.mxu0 0
        %878 = vmatpush.bf16.msra.mxu0 0
        %879 = vmatpush.bf16.msra.mxu0 %v856
        %880 = vmatmul.bf16.gmra.mxu0 %v850
        %v881 = vpop.f32.mrf.mxu0
        %v882 = vadd.f32 0.0, %v881
        %v883 = vpop.f32.mrf.mxu0
        %v884 = vadd.f32 0.0, %v883
        %885 = vdwg.mxu0
        %v886 = vadd.f32 %v818, %v868
        %v887 = vadd.f32 %v832, %v882
        %v888 = vadd.f32 %v820, %v870
        %v889 = vadd.f32 %v834, %v884
        %s890 = scalar_lea.vmem %s2, 24
        %v891 = vld [vmem:[%s890] sm:$0xf]
        %v892 = vld [vmem:[%s890 + $0x4] sm:$0xf]
        %v895 = vunpack.c.l.b16 %v891
        %v896 = vunpack.c.l.b16 %v892
        %v897 = vpack.c.b16 %v896, %v895
        %v899 = vunpack.c.l.b16 %v729
        %v900 = vunpack.c.h.b16 %v729
        %v901 = vpack.c.b16 %v899, %v899
        %v902 = vpack.c.b16 %v900, %v900
        %v904 = vsel %vm750, %v897, 0
        %v907 = vsel %vm754, %v901, 0
        %v910 = vsel %vm754, %v902, 0
        %912 = vmatpush.bf16.msra.mxu0 0
        %913 = vmatpush.bf16.msra.mxu0 0
        %914 = vmatpush.bf16.msra.mxu0 0
        %915 = vmatpush.bf16.msra.mxu0 0
        %916 = vmatpush.bf16.msra.mxu0 0
        %917 = vmatpush.bf16.msra.mxu0 0
        %918 = vmatpush.bf16.msra.mxu0 0
        %919 = vmatpush.bf16.msra.mxu0 %v907
        %920 = vmatmul.bf16.gmra.mxu0 %v904
        %v921 = vpop.f32.mrf.mxu0
        %v922 = vadd.f32 0.0, %v921
        %v923 = vpop.f32.mrf.mxu0
        %v924 = vadd.f32 0.0, %v923
        %925 = vdwg.mxu0
        %926 = vmatpush.bf16.msra.mxu0 0
        %927 = vmatpush.bf16.msra.mxu0 0
        %928 = vmatpush.bf16.msra.mxu0 0
        %929 = vmatpush.bf16.msra.mxu0 0
        %930 = vmatpush.bf16.msra.mxu0 0
        %931 = vmatpush.bf16.msra.mxu0 0
        %932 = vmatpush.bf16.msra.mxu0 0
        %933 = vmatpush.bf16.msra.mxu0 %v910
        %934 = vmatmul.bf16.gmra.mxu0 %v904
        %v935 = vpop.f32.mrf.mxu0
        %v936 = vadd.f32 0.0, %v935
        %v937 = vpop.f32.mrf.mxu0
        %v938 = vadd.f32 0.0, %v937
        %939 = vdwg.mxu0
        %v940 = vadd.f32 %v886, %v922
        %v941 = vadd.f32 %v887, %v936
        %v942 = vadd.f32 %v888, %v924
        %v943 = vadd.f32 %v889, %v938
        %s944 = scalar_lea.vmem %s2, 32
        %v945 = vld [vmem:[%s944] sm:$0xf]
        %v946 = vld [vmem:[%s944 + $0x4] sm:$0xf]
        %v949 = vunpack.c.l.b16 %v945
        %v950 = vunpack.c.l.b16 %v946
        %v951 = vpack.c.b16 %v950, %v949
        %v953 = vunpack.c.l.b16 %v730
        %v954 = vunpack.c.h.b16 %v730
        %v955 = vpack.c.b16 %v953, %v953
        %v956 = vpack.c.b16 %v954, %v954
        %v958 = vsel %vm750, %v951, 0
        %v961 = vsel %vm754, %v955, 0
        %v964 = vsel %vm754, %v956, 0
        %966 = vmatpush.bf16.msra.mxu0 0
        %967 = vmatpush.bf16.msra.mxu0 0
        %968 = vmatpush.bf16.msra.mxu0 0
        %969 = vmatpush.bf16.msra.mxu0 0
        %970 = vmatpush.bf16.msra.mxu0 0
        %971 = vmatpush.bf16.msra.mxu0 0
        %972 = vmatpush.bf16.msra.mxu0 0
        %973 = vmatpush.bf16.msra.mxu0 %v961
        %974 = vmatmul.bf16.gmra.mxu0 %v958
        %v975 = vpop.f32.mrf.mxu0
        %v976 = vadd.f32 0.0, %v975
        %v977 = vpop.f32.mrf.mxu0
        %v978 = vadd.f32 0.0, %v977
        %979 = vdwg.mxu0
        %980 = vmatpush.bf16.msra.mxu0 0
        %981 = vmatpush.bf16.msra.mxu0 0
        %982 = vmatpush.bf16.msra.mxu0 0
        %983 = vmatpush.bf16.msra.mxu0 0
        %984 = vmatpush.bf16.msra.mxu0 0
        %985 = vmatpush.bf16.msra.mxu0 0
        %986 = vmatpush.bf16.msra.mxu0 0
        %987 = vmatpush.bf16.msra.mxu0 %v964
        %988 = vmatmul.bf16.gmra.mxu0 %v958
        %v989 = vpop.f32.mrf.mxu0
        %v990 = vadd.f32 0.0, %v989
        %v991 = vpop.f32.mrf.mxu0
        %v992 = vadd.f32 0.0, %v991
        %993 = vdwg.mxu0
        %v994 = vadd.f32 %v940, %v976
        %v995 = vadd.f32 %v941, %v990
        %v996 = vadd.f32 %v942, %v978
        %v997 = vadd.f32 %v943, %v992
        %s998 = scalar_lea.vmem %s2, 40
        %v999 = vld [vmem:[%s998] sm:$0xf]
        %v1000 = vld [vmem:[%s998 + $0x4] sm:$0xf]
        %v1003 = vunpack.c.l.b16 %v999
        %v1004 = vunpack.c.l.b16 %v1000
        %v1005 = vpack.c.b16 %v1004, %v1003
        %v1007 = vunpack.c.l.b16 %v731
        %v1008 = vunpack.c.h.b16 %v731
        %v1009 = vpack.c.b16 %v1007, %v1007
        %v1010 = vpack.c.b16 %v1008, %v1008
        %v1012 = vsel %vm750, %v1005, 0
        %v1015 = vsel %vm754, %v1009, 0
        %v1018 = vsel %vm754, %v1010, 0
        %1020 = vmatpush.bf16.msra.mxu0 0
        %1021 = vmatpush.bf16.msra.mxu0 0
        %1022 = vmatpush.bf16.msra.mxu0 0
        %1023 = vmatpush.bf16.msra.mxu0 0
        %1024 = vmatpush.bf16.msra.mxu0 0
        %1025 = vmatpush.bf16.msra.mxu0 0
        %1026 = vmatpush.bf16.msra.mxu0 0
        %1027 = vmatpush.bf16.msra.mxu0 %v1015
        %1028 = vmatmul.bf16.gmra.mxu0 %v1012
        %v1029 = vpop.f32.mrf.mxu0
        %v1030 = vadd.f32 0.0, %v1029
        %v1031 = vpop.f32.mrf.mxu0
        %v1032 = vadd.f32 0.0, %v1031
        %1033 = vdwg.mxu0
        %1034 = vmatpush.bf16.msra.mxu0 0
        %1035 = vmatpush.bf16.msra.mxu0 0
        %1036 = vmatpush.bf16.msra.mxu0 0
        %1037 = vmatpush.bf16.msra.mxu0 0
        %1038 = vmatpush.bf16.msra.mxu0 0
        %1039 = vmatpush.bf16.msra.mxu0 0
        %1040 = vmatpush.bf16.msra.mxu0 0
        %1041 = vmatpush.bf16.msra.mxu0 %v1018
        %1042 = vmatmul.bf16.gmra.mxu0 %v1012
        %v1043 = vpop.f32.mrf.mxu0
        %v1044 = vadd.f32 0.0, %v1043
        %v1045 = vpop.f32.mrf.mxu0
        %v1046 = vadd.f32 0.0, %v1045
        %1047 = vdwg.mxu0
        %v1048 = vadd.f32 %v994, %v1030
        %v1049 = vadd.f32 %v995, %v1044
        %v1050 = vadd.f32 %v996, %v1032
        %v1051 = vadd.f32 %v997, %v1046
        %s1052 = scalar_lea.vmem %s2, 48
        %v1053 = vld [vmem:[%s1052] sm:$0xf]
        %v1054 = vld [vmem:[%s1052 + $0x4] sm:$0xf]
        %v1057 = vunpack.c.l.b16 %v1053
        %v1058 = vunpack.c.l.b16 %v1054
        %v1059 = vpack.c.b16 %v1058, %v1057
        %v1061 = vunpack.c.l.b16 %v732
        %v1062 = vunpack.c.h.b16 %v732
        %v1063 = vpack.c.b16 %v1061, %v1061
        %v1064 = vpack.c.b16 %v1062, %v1062
        %v1066 = vsel %vm750, %v1059, 0
        %v1069 = vsel %vm754, %v1063, 0
        %v1072 = vsel %vm754, %v1064, 0
        %1074 = vmatpush.bf16.msra.mxu0 0
        %1075 = vmatpush.bf16.msra.mxu0 0
        %1076 = vmatpush.bf16.msra.mxu0 0
        %1077 = vmatpush.bf16.msra.mxu0 0
        %1078 = vmatpush.bf16.msra.mxu0 0
        %1079 = vmatpush.bf16.msra.mxu0 0
        %1080 = vmatpush.bf16.msra.mxu0 0
        %1081 = vmatpush.bf16.msra.mxu0 %v1069
        %1082 = vmatmul.bf16.gmra.mxu0 %v1066
        %v1083 = vpop.f32.mrf.mxu0
        %v1084 = vadd.f32 0.0, %v1083
        %v1085 = vpop.f32.mrf.mxu0
        %v1086 = vadd.f32 0.0, %v1085
        %1087 = vdwg.mxu0
        %1088 = vmatpush.bf16.msra.mxu0 0
        %1089 = vmatpush.bf16.msra.mxu0 0
        %1090 = vmatpush.bf16.msra.mxu0 0
        %1091 = vmatpush.bf16.msra.mxu0 0
        %1092 = vmatpush.bf16.msra.mxu0 0
        %1093 = vmatpush.bf16.msra.mxu0 0
        %1094 = vmatpush.bf16.msra.mxu0 0
        %1095 = vmatpush.bf16.msra.mxu0 %v1072
        %1096 = vmatmul.bf16.gmra.mxu0 %v1066
        %v1097 = vpop.f32.mrf.mxu0
        %v1098 = vadd.f32 0.0, %v1097
        %v1099 = vpop.f32.mrf.mxu0
        %v1100 = vadd.f32 0.0, %v1099
        %1101 = vdwg.mxu0
        %v1102 = vadd.f32 %v1048, %v1084
        %v1103 = vadd.f32 %v1049, %v1098
        %v1104 = vadd.f32 %v1050, %v1086
        %v1105 = vadd.f32 %v1051, %v1100
        %s1106 = scalar_lea.vmem %s2, 56
        %v1107 = vld [vmem:[%s1106] sm:$0xf]
        %v1108 = vld [vmem:[%s1106 + $0x4] sm:$0xf]
        %v1111 = vunpack.c.l.b16 %v1107
        %v1112 = vunpack.c.l.b16 %v1108
        %v1113 = vpack.c.b16 %v1112, %v1111
        %v1115 = vunpack.c.l.b16 %v733
        %v1116 = vunpack.c.h.b16 %v733
        %v1117 = vpack.c.b16 %v1115, %v1115
        %v1118 = vpack.c.b16 %v1116, %v1116
        %v1120 = vsel %vm750, %v1113, 0
        %v1123 = vsel %vm754, %v1117, 0
        %v1126 = vsel %vm754, %v1118, 0
        %1128 = vmatpush.bf16.msra.mxu0 0
        %1129 = vmatpush.bf16.msra.mxu0 0
        %1130 = vmatpush.bf16.msra.mxu0 0
        %1131 = vmatpush.bf16.msra.mxu0 0
        %1132 = vmatpush.bf16.msra.mxu0 0
        %1133 = vmatpush.bf16.msra.mxu0 0
        %1134 = vmatpush.bf16.msra.mxu0 0
        %1135 = vmatpush.bf16.msra.mxu0 %v1123
        %1136 = vmatmul.bf16.gmra.mxu0 %v1120
        %v1137 = vpop.f32.mrf.mxu0
        %v1138 = vadd.f32 0.0, %v1137
        %v1139 = vpop.f32.mrf.mxu0
        %v1140 = vadd.f32 0.0, %v1139
        %1141 = vdwg.mxu0
        %1142 = vmatpush.bf16.msra.mxu0 0
        %1143 = vmatpush.bf16.msra.mxu0 0
        %1144 = vmatpush.bf16.msra.mxu0 0
        %1145 = vmatpush.bf16.msra.mxu0 0
        %1146 = vmatpush.bf16.msra.mxu0 0
        %1147 = vmatpush.bf16.msra.mxu0 0
        %1148 = vmatpush.bf16.msra.mxu0 0
        %1149 = vmatpush.bf16.msra.mxu0 %v1126
        %1150 = vmatmul.bf16.gmra.mxu0 %v1120
        %v1151 = vpop.f32.mrf.mxu0
        %v1152 = vadd.f32 0.0, %v1151
        %v1153 = vpop.f32.mrf.mxu0
        %v1154 = vadd.f32 0.0, %v1153
        %1155 = vdwg.mxu0
        %v1156 = vadd.f32 %v1102, %v1138
        %v1157 = vadd.f32 %v1103, %v1152
        %v1158 = vadd.f32 %v1104, %v1140
        %v1159 = vadd.f32 %v1105, %v1154
        %s1160 = scalar_lea.vmem %s2, 64
        %v1161 = vld [vmem:[%s1160] sm:$0xf]
        %v1162 = vld [vmem:[%s1160 + $0x4] sm:$0xf]
        %v1165 = vunpack.c.l.b16 %v1161
        %v1166 = vunpack.c.l.b16 %v1162
        %v1167 = vpack.c.b16 %v1166, %v1165
        %v1169 = vunpack.c.l.b16 %v734
        %v1170 = vunpack.c.h.b16 %v734
        %v1171 = vpack.c.b16 %v1169, %v1169
        %v1172 = vpack.c.b16 %v1170, %v1170
        %v1174 = vsel %vm750, %v1167, 0
        %v1177 = vsel %vm754, %v1171, 0
        %v1180 = vsel %vm754, %v1172, 0
        %1182 = vmatpush.bf16.msra.mxu0 0
        %1183 = vmatpush.bf16.msra.mxu0 0
        %1184 = vmatpush.bf16.msra.mxu0 0
        %1185 = vmatpush.bf16.msra.mxu0 0
        %1186 = vmatpush.bf16.msra.mxu0 0
        %1187 = vmatpush.bf16.msra.mxu0 0
        %1188 = vmatpush.bf16.msra.mxu0 0
        %1189 = vmatpush.bf16.msra.mxu0 %v1177
        %1190 = vmatmul.bf16.gmra.mxu0 %v1174
        %v1191 = vpop.f32.mrf.mxu0
        %v1192 = vadd.f32 0.0, %v1191
        %v1193 = vpop.f32.mrf.mxu0
        %v1194 = vadd.f32 0.0, %v1193
        %1195 = vdwg.mxu0
        %1196 = vmatpush.bf16.msra.mxu0 0
        %1197 = vmatpush.bf16.msra.mxu0 0
        %1198 = vmatpush.bf16.msra.mxu0 0
        %1199 = vmatpush.bf16.msra.mxu0 0
        %1200 = vmatpush.bf16.msra.mxu0 0
        %1201 = vmatpush.bf16.msra.mxu0 0
        %1202 = vmatpush.bf16.msra.mxu0 0
        %1203 = vmatpush.bf16.msra.mxu0 %v1180
        %1204 = vmatmul.bf16.gmra.mxu0 %v1174
        %v1205 = vpop.f32.mrf.mxu0
        %v1206 = vadd.f32 0.0, %v1205
        %v1207 = vpop.f32.mrf.mxu0
        %v1208 = vadd.f32 0.0, %v1207
        %1209 = vdwg.mxu0
        %v1210 = vadd.f32 %v1156, %v1192
        %v1211 = vadd.f32 %v1157, %v1206
        %v1212 = vadd.f32 %v1158, %v1194
        %v1213 = vadd.f32 %v1159, %v1208
        %v1214 = vadd.f32 %v1210, %v1211
        %1215 = vadd.xlane.f32.xlu0 %v1214
        %v1216 = vpop.xlane.xlu0 %1215
        %v1217 = vadd.f32 %v1212, %v1213
        %1218 = vadd.xlane.f32.xlu0 %v1217
        %v1219 = vpop.xlane.xlu0 %1218
        %v1220 = vld [vmem:[%s3] sm:$0xff]
        %v1221 = vld [vmem:[%s3 + $0x8] sm:$0xff]
        %vm1222 = vcmask 130048
        %v1224 = vsel %vm1222, %v1220, 0
        %v1227 = vsel %vm1222, %v1221, 0
        %1229 = vmatpush.msra.mxu0 0.0
        %1230 = vmatpush.msra.mxu0 0.0
        %1231 = vmatpush.msra.mxu0 0.0
        %1232 = vmatpush.msra.mxu0 0.0
        %1233 = vmatpush.msra.mxu0 0.0
        %1234 = vmatpush.msra.mxu0 0.0
        %1235 = vmatpush.msra.mxu0 0.0
        %1236 = vmatpush.msra.mxu0 0.0
        %1237 = vmatpush.msra.mxu0 0.0
        %1238 = vmatpush.msra.mxu0 0.0
        %1239 = vmatpush.msra.mxu0 0.0
        %1240 = vmatpush.msra.mxu0 0.0
        %1241 = vmatpush.msra.mxu0 0.0
        %1242 = vmatpush.msra.mxu0 0.0
        %1243 = vmatpush.msra.mxu0 %v1219
        %1244 = vmatpush.msra.mxu0 %v1216
        %1245 = vmatmul.f32.gmra.mxu0 %v1224
        %v1246 = vpop.f32.mrf.mxu0
        %v1247 = vadd.f32 0.0, %v1246
        %1248 = vmatmul.f32.gmra.mxu0 %v1227
        %v1249 = vpop.f32.mrf.mxu0
        %v1250 = vadd.f32 0.0, %v1249
        %1251 = vdwg.mxu0
        %1253 = vset.pattern.permute.xlu0 0
        %1254 = vperm.xlu0 %1253, %v1247
        %v1255 = vpop.permute.xlu0 %1254
        %1258 = vset.pattern.permute.xlu0 0
        %1259 = vperm.xlu0 %1258, %v1250
        %v1260 = vpop.permute.xlu0 %1259
        %v1262 = vsub.f32 %v1210, %v1255
        %v1263 = vsub.f32 %v1211, %v1255
        %v1264 = vsub.f32 %v1212, %v1260
        %v1265 = vsub.f32 %v1213, %v1260
        %v1266 = vmul.f32 %v1262, %v1262
        %v1267 = vmul.f32 %v1263, %v1263
        %v1268 = vmul.f32 %v1264, %v1264
        %v1269 = vmul.f32 %v1265, %v1265
        %v1270 = vadd.f32 %v1266, %v1267
        %1271 = vadd.xlane.f32.xlu0 %v1270
        %v1272 = vpop.xlane.xlu0 %1271
        %v1273 = vadd.f32 %v1268, %v1269
        %1274 = vadd.xlane.f32.xlu0 %v1273
        %v1275 = vpop.xlane.xlu0 %1274
        %1276 = vmatpush.msra.mxu0 0.0
        %1277 = vmatpush.msra.mxu0 0.0
        %1278 = vmatpush.msra.mxu0 0.0
        %1279 = vmatpush.msra.mxu0 0.0
        %1280 = vmatpush.msra.mxu0 0.0
        %1281 = vmatpush.msra.mxu0 0.0
        %1282 = vmatpush.msra.mxu0 0.0
        %1283 = vmatpush.msra.mxu0 0.0
        %1284 = vmatpush.msra.mxu0 0.0
        %1285 = vmatpush.msra.mxu0 0.0
        %1286 = vmatpush.msra.mxu0 0.0
        %1287 = vmatpush.msra.mxu0 0.0
        %1288 = vmatpush.msra.mxu0 0.0
        %1289 = vmatpush.msra.mxu0 0.0
        %1290 = vmatpush.msra.mxu0 %v1275
        %1291 = vmatpush.msra.mxu0 %v1272
        %1292 = vmatmul.f32.gmra.mxu0 %v1224
        %v1293 = vpop.f32.mrf.mxu0
        %v1294 = vadd.f32 1e-05, %v1293
        %1295 = vmatmul.f32.gmra.mxu0 %v1227
        %v1296 = vpop.f32.mrf.mxu0
        %v1297 = vadd.f32 1e-05, %v1296
        %1298 = vdwg.mxu0
        %v1299 = vrsqrt.pop %v1294
        %v1300 = vmul.f32 %v1299, %v1294
        %v1301 = vmul.f32 %v1300, %v1299
        %v1302 = vmul.f32 0.5, %v1301
        %v1303 = vsub.f32 1.5, %v1302
        %v1304 = vmul.f32 %v1299, %v1303
        %vm1305 = vweird.f32 %v1294
        %vm1306 = vweird.f32 %v1299
        %vm1307 = vmor %vm1305, %vm1306
        %v1308 = vsel %vm1307, %v1299, %v1304
        %v1309 = vrsqrt.pop %v1297
        %v1310 = vmul.f32 %v1309, %v1297
        %v1311 = vmul.f32 %v1310, %v1309
        %v1312 = vmul.f32 0.5, %v1311
        %v1313 = vsub.f32 1.5, %v1312
        %v1314 = vmul.f32 %v1309, %v1313
        %vm1315 = vweird.f32 %v1297
        %vm1316 = vweird.f32 %v1309
        %vm1317 = vmor %vm1315, %vm1316
        %v1318 = vsel %vm1317, %v1309, %v1314
        %v1319 = vld [vmem:[%s4] sm:$0xff]
        %v1320 = vld [vmem:[%s4 + $0x8] sm:$0xff]
        %v1321 = vmul.f32 %v1308, %v1319
        %v1322 = vmul.f32 %v1318, %v1320
        %1324 = vset.pattern.permute.xlu0 0
        %1325 = vperm.xlu0 %1324, %v1321
        %v1326 = vpop.permute.xlu0 %1325
        %1329 = vset.pattern.permute.xlu0 0
        %1330 = vperm.xlu0 %1329, %v1322
        %v1331 = vpop.permute.xlu0 %1330
        %v1333 = vmul.f32 %v1262, %v1326
        %v1334 = vmul.f32 %v1263, %v1326
        %v1335 = vmul.f32 %v1264, %v1331
        %v1336 = vmul.f32 %v1265, %v1331
        %v1337 = vld [vmem:[%s5] sm:$0xff]
        %v1338 = vld [vmem:[%s5 + $0x8] sm:$0xff]
        %1340 = vset.pattern.permute.xlu0 0
        %1341 = vperm.xlu0 %1340, %v1337
        %v1342 = vpop.permute.xlu0 %1341
        %1345 = vset.pattern.permute.xlu0 0
        %1346 = vperm.xlu0 %1345, %v1338
        %v1347 = vpop.permute.xlu0 %1346
        %v1349 = vadd.f32 %v1333, %v1342
        %v1350 = vadd.f32 %v1334, %v1342
        %v1351 = vadd.f32 %v1335, %v1347
        %v1352 = vadd.f32 %v1336, %v1347
        %v1353 = vmax.f32 %v1349, 0.0
        %v1354 = vmax.f32 %v1350, 0.0
        %v1355 = vmax.f32 %v1351, 0.0
        %v1356 = vmax.f32 %v1352, 0.0
        %1357 = vst [vmem:[%s311] sm:$0xff] %v1353
        %1358 = vst [vmem:[%s311 + $0x8] sm:$0xff] %v1354
        %1359 = vst [vmem:[%s311 + $0x10] sm:$0xff] %v1355
        %1360 = vst [vmem:[%s311 + $0x18] sm:$0xff] %v1356
        %s1361 = sand.u32 %s170, 1
        %s1362 = scalar_lea.sflag [#allocation4], %s1361
        %s1363 = sand.u32 %s170, 1
        %s1364 = smul.addr %s1363, 32
        %s1365 = scalar_lea.vmem [#allocation7], %s1364
        // Predicated region
        $region53: #{tpu_custom_call.1} parent=43 // pred_check
          %p1366 = pneg %p180
        $region54: #{tpu_custom_call.1} parent=43 // pred_check_branch
          %1368 = sbr.rel (%p1366) target = $region56
        $region55: #{tpu_custom_call.1} parent=43 // pred_region
          %1370 = vsyncadd %s1362, 0
          %s1371 = smul.addr %s26, 4
          %s1372 = smul.addr %s1371, 8
          %s1373 = scalar_lea.hbm %s6, %s1372
          %s1374 = sshll.u32 %s1365, 4
          %s1375 = int_to_ptr.vmem [resolvable:$true] %s1374
          %s1376 = sshll.u32 %s1373, 4
          %s1377 = int_to_ptr.hbm [resolvable:$true] %s1376
          %1382 = dma.vmem_to_hbm [thread:$0]  %s1375, 512, %s1377, %s1362, 256, 256, 16
        $region56: #{tpu_custom_call.1} parent=43 // pred_fallthru
          _
      $region44: #{tpu_custom_call.1} parent=5 // pred_fallthru
        _
      %p1383 = scmp.le.s32.totalorder 2, %s21
      // Predicated region
      $region57: #{tpu_custom_call.1} parent=5 // pred_check
        %p1384 = pneg %p1383
      $region58: #{tpu_custom_call.1} parent=5 // pred_check_branch
        %1386 = sbr.rel (%p1384) target = $region60
      $region59: #{tpu_custom_call.1} parent=5 // pred_region
        %s1387 = ssub.s32 %s21, 2
        // Predicated region
        $region61: #{tpu_custom_call.1} parent=59 // pred_check
          %p1388 = pneg %p186
        $region62: #{tpu_custom_call.1} parent=59 // pred_check_branch
          %1390 = sbr.rel (%p1388) target = $region64
        $region63: #{tpu_custom_call.1} parent=59 // pred_region
          %s1391 = sand.u32 %s171, 1
          %s1392 = scalar_lea.sflag [#allocation4], %s1391
          %s1393 = sand.u32 %s171, 1
          %s1394 = smul.addr %s1393, 32
          %s1395 = scalar_lea.vmem [#allocation7], %s1394
          %1397 = dma.done %s1392, 512
        $region64: #{tpu_custom_call.1} parent=59 // pred_fallthru
          _
      $region60: #{tpu_custom_call.1} parent=5 // pred_fallthru
        _
    $region6: #{tpu_custom_call.1} parent=1 // loop_footer
      %s25 = sadd.s32 1, %s21
    $region7: #{tpu_custom_call.1} parent=1 // loop_footer_branch
      %20 = sbr.rel target = $region3
    $region8: #{tpu_custom_call.1} parent=1 // loop_exit
      _
    %1398 = vsyncpa [#allocation3], 1
    %s1399 = scalar_lea.sflag [#allocation3], 1
    %1400 = vsyncpa %s1399, 1
    %1401 = vsyncpa [#allocation6], 1
    %s1402 = scalar_lea.sflag [#allocation6], 1
    %1403 = vsyncpa %s1402, 1
    %1404 = vsyncpa [#allocation4], 1
    %s1405 = scalar_lea.sflag [#allocation4], 1
    %1406 = vsyncpa %s1405, 1

</llo_original>
